<compile_context>
chip_gen: v5e
topology: v5e:2x2
jax: 0.10.0
libtpu: 0.0.40
codegen_flags: <defaults>
</compile_context>

<pallas_src>
import functools

import jax
import jax.numpy as jnp
from jax.experimental import pallas as pl
from jax.experimental.pallas import tpu as pltpu


def _relu(v):
    return jnp.maximum(v, 0.0)


def _softmax2(v):
    # numerically-stable softmax over the (tiny) last dim; divide moved to the EUP.
    m = jnp.max(v, axis=-1, keepdims=True)
    e = jnp.exp(v - m)
    return e * pl.reciprocal(jnp.sum(e, axis=-1, keepdims=True), approx=True)


# --------------------------------- kernel ---------------------------------

def hybrid_kernel(
    x_ref,       # (TB, P*F)            f32
    pm1_ref,     # (P*F + 1,  P*2H)     bf16  fused particle-map layer 1 (block-diag) + bias row
    pm2_ref,     # (P*2H + 1, P*2L)     bf16  fused particle-map layer 2 (block-diag) + bias row
    head1_ref,   # (P*2L + 1, Hc+Hw+Hi) bf16  head layer 1 (particle sum folded, Lorentz lanes 0) + bias row
    li1_ref,     # (1, Hc+Hw+Hi)        f32   Lorentz layer-1 weight row (zeros outside its lanes)
    mh_ref,      # (Hc+Hw+Hi + 1, Hw+4) bf16  merged tiny heads [ws2 | gc2 | li2] (block-diag) + bias row
    ws3_ref,     # (Hw + 1, 2)          bf16  weight-net head + bias row
    out_ref,     # (TB, 2)              f32
    *, P, F, H, L, Hc, Hw, Hi,
):
    PF = P * F
    PH2 = P * 2 * H
    PL2 = P * 2 * L
    NH = Hc + Hw + Hi        # fused head width
    bf16 = jnp.bfloat16

    x = x_ref[...]                                                          # (TB, P*F) f32
    xb = x.astype(bf16)

    # ---- fused per-particle MLPs (general PFN mapping + weight-net mapping), bf16 MXU ----
    h1 = _relu(jnp.dot(xb, pm1_ref[0:PF, :], preferred_element_type=jnp.float32)
               + pm1_ref[PF:PF + 1, :])                                     # (TB, P*2H)
    h2 = _relu(jnp.dot(h1.astype(bf16), pm2_ref[0:PH2, :],
                       preferred_element_type=jnp.float32)
               + pm2_ref[PH2:PH2 + 1, :])                                   # (TB, P*2L)

    # ---- Lorentz invariant mass^2 in f32 on the VPU (no MXU, no array constants) ----
    tot = x[:, 0:F]
    for p in range(1, P):
        tot = tot + x[:, p * F:(p + 1) * F]                                 # (TB, F)
    m2 = (tot[:, 0:1] * tot[:, 0:1] - tot[:, 1:2] * tot[:, 1:2]
          - tot[:, 2:3] * tot[:, 2:3] - tot[:, 3:4] * tot[:, 3:4])          # (TB, 1)

    # ---- head layer 1 (particle sum folded into the tiled weight), fused with the Lorentz
    #      layer-1 (K=1 -> VPU broadcast multiply into the extra Hi lanes) ----
    pre = (jnp.dot(h2.astype(bf16), head1_ref[0:PL2, :],
                   preferred_element_type=jnp.float32)
           + head1_ref[PL2:PL2 + 1, :]
           + m2 * li1_ref[...])                                             # (TB, Hc+Hw+Hi)
    heads = _relu(pre)

    # ---- merged tiny heads: [ws2 (Hw) | gc2 (2) | li2 (2)] in one block-diag matmul ----
    mh = (jnp.dot(heads.astype(bf16), mh_ref[0:NH, :],
                  preferred_element_type=jnp.float32)
          + mh_ref[NH:NH + 1, :])                                           # (TB, Hw+4)
    hw2 = _relu(mh[:, 0:Hw])                                                # weight-net hidden 2
    general = _softmax2(mh[:, Hw:Hw + 2])                                   # general PFN softmax
    invariant = _softmax2(mh[:, Hw + 2:Hw + 4])                             # Lorentz softmax

    # ---- weight-net head ----
    w = _softmax2(jnp.dot(hw2.astype(bf16), ws3_ref[0:Hw, :],
                          preferred_element_type=jnp.float32)
                  + ws3_ref[Hw:Hw + 1, :])                                  # (TB, 2)

    out_ref[...] = general * w[:, 0:1] + invariant * w[:, 1:2]


# ------------------------- wrapper-side packing (free layout plumbing) -------------------------

def pack_params(params, P):
    (gm_w1, gm_b1, gm_w2, gm_b2,
     gc_w1, gc_b1, gc_w2, gc_b2,
     li_w1, li_b1, li_w2, li_b2,
     wm_w1, wm_b1, wm_w2, wm_b2,
     ws_w1, ws_b1, ws_w2, ws_b2, ws_w3, ws_b3) = params

    F, H = gm_w1.shape
    L = gm_w2.shape[1]
    Hc = gc_w1.shape[1]
    Hi = li_w1.shape[1]
    Hw = ws_w1.shape[1]
    bf16 = jnp.bfloat16
    eyeP = jnp.eye(P, dtype=jnp.float32)

    # per-particle layer 1:  x_p (F)  ->  [general hidden H | weight-net hidden H]
    w1f = jnp.concatenate([gm_w1, wm_w1], axis=1)                  # (F, 2H)
    b1f = jnp.concatenate([gm_b1, wm_b1], axis=1)                  # (1, 2H)
    pm1 = jnp.concatenate([jnp.kron(eyeP, w1f), jnp.tile(b1f, (1, P))], axis=0).astype(bf16)

    # per-particle layer 2:  [gh | wh] -> [general latent L | weight-net latent L]
    w2f = jax.scipy.linalg.block_diag(gm_w2, wm_w2)                # (2H, 2L)
    b2f = jnp.concatenate([gm_b2, wm_b2], axis=1)                  # (1, 2L)
    pm2 = jnp.concatenate([jnp.kron(eyeP, w2f), jnp.tile(b2f, (1, P))], axis=0).astype(bf16)

    # head layer 1: permutation-invariant particle sum folded in via tiling over P.
    # Extra Hi output lanes (Lorentz hidden) get zero weights here; bias carries li_b1.
    wh = jax.scipy.linalg.block_diag(gc_w1, ws_w1)                 # (2L, Hc+Hw)
    wh = jnp.concatenate([wh, jnp.zeros((2 * L, Hi), jnp.float32)], axis=1)
    bh = jnp.concatenate([gc_b1, ws_b1, li_b1], axis=1)            # (1, Hc+Hw+Hi)
    head1 = jnp.concatenate([jnp.tile(wh, (P, 1)), bh], axis=0).astype(bf16)

    # Lorentz layer-1 weight (K=1) stays an f32 VPU row placed in the Hi lanes.
    li1 = jnp.concatenate([jnp.zeros((1, Hc + Hw), jnp.float32), li_w1], axis=1)

    # merged tiny heads: block-diagonal over [gc hidden | ws hidden | lorentz hidden] inputs,
    # output lanes ordered [ws2 (Hw) | gc2 (2) | li2 (2)] so the wide block starts at lane 0.
    z = lambda r, c: jnp.zeros((r, c), jnp.float32)
    top = jnp.concatenate([z(Hc, Hw), gc_w2, z(Hc, 2)], axis=1)
    mid = jnp.concatenate([ws_w2, z(Hw, 2), z(Hw, 2)], axis=1)
    bot = jnp.concatenate([z(Hi, Hw), z(Hi, 2), li_w2], axis=1)
    mb = jnp.concatenate([ws_b2, gc_b2, li_b2], axis=1)
    mh = jnp.concatenate([top, mid, bot, mb], axis=0).astype(bf16)  # (Hc+Hw+Hi+1, Hw+4)

    ws3 = jnp.concatenate([ws_w3, ws_b3], axis=0).astype(bf16)      # (Hw+1, 2)

    slabs = (pm1, pm2, head1, li1, mh, ws3)
    dims = dict(P=P, F=F, H=H, L=L, Hc=Hc, Hw=Hw, Hi=Hi)
    return slabs, dims


def _round_up(n, m):
    return ((n + m - 1) // m) * m


def hybrid_classifier(x, params, *, block_b=1024):
    """x: (B, P, 4) f32. params: flat tuple of raw (unfused) f32 weight/bias arrays."""
    B, P, F = x.shape
    x2d = x.reshape(B, P * F)                      # wrapper-side flatten (lane-dense input)
    slabs, dims = pack_params(params, P)

    TB = min(block_b, _round_up(B, 8))
    if _round_up(B, 8) > 8:
        # v7x megacore: keep >= 2 "parallel" grid steps so both TensorCores get work.
        TB = min(TB, _round_up((B + 1) // 2, 8))
    TB = max(TB, 8)
    B_pad = _round_up(B, TB)
    if B_pad != B:
        x2d = jnp.pad(x2d, ((0, B_pad - B), (0, 0)))

    P_, F_, H, L = dims["P"], dims["F"], dims["H"], dims["L"]
    Hc, Hw, Hi = dims["Hc"], dims["Hw"], dims["Hi"]
    NH = Hc + Hw + Hi
    flops = 2 * B_pad * (P_ * F_ * P_ * 2 * H + P_ * 2 * H * P_ * 2 * L
                         + P_ * 2 * L * NH + NH * (Hw + 4) + Hw * 2)
    bytes_accessed = (x2d.size * 4 + B_pad * 2 * 4
                      + sum(int(s.size) * s.dtype.itemsize for s in slabs))
    cost = pl.CostEstimate(flops=flops, transcendentals=9 * B_pad,
                           bytes_accessed=bytes_accessed)

    kern = functools.partial(hybrid_kernel, **dims)
    wspec = lambda a: pl.BlockSpec(a.shape, lambda i: (0, 0))  # VMEM-resident across steps

    out = pl.pallas_call(
        kern,
        out_shape=jax.ShapeDtypeStruct((B_pad, 2), jnp.float32),
        grid=(B_pad // TB,),
        in_specs=[pl.BlockSpec((TB, P * F), lambda i: (i, 0))]
                 + [wspec(s) for s in slabs],
        out_specs=pl.BlockSpec((TB, 2), lambda i: (i, 0)),
        compiler_params=pltpu.CompilerParams(
            dimension_semantics=("parallel",),          # shard batch steps across TCs (v7x)
            vmem_limit_bytes=32 * 1024 * 1024),         # fits v5e/v6e/v7x
        cost_estimate=cost,
    )(x2d, *slabs)
    return out[:B]


# ------------------------- parameter construction (plain-JAX glue) -------------------------

def _linear_params(key, fan_in, fan_out):
    kw, kb = jax.random.split(key)
    bound = 1.0 / jnp.sqrt(fan_in)
    w = jax.random.uniform(kw, (fan_in, fan_out), jnp.float32, -bound, bound)
    b = jax.random.uniform(kb, (1, fan_out), jnp.float32, -bound, bound)
    return w, b


def _fold_bn(w, b, gamma, beta, running_mean, running_var, eps=1e-5):
    # y = (xW + b - mean) / sqrt(var + eps) * gamma + beta  (eval mode)
    scale = gamma / jnp.sqrt(running_var + eps)
    return w * scale[None, :], (b - running_mean[None, :]) * scale[None, :] + beta[None, :]


def make_params(key, latent=32, map_hidden=32, clf_hidden=32, inv_hidden=32, wnet_hidden=32):
    keys = jax.random.split(key, 12)
    gm_w1, gm_b1 = _linear_params(keys[0], 4, map_hidden)
    gm_w2, gm_b2 = _linear_params(keys[1], map_hidden, latent)
    gc_w1, gc_b1 = _linear_params(keys[2], latent, clf_hidden)
    gc_w2, gc_b2 = _linear_params(keys[3], clf_hidden, 2)
    li_w1, li_b1 = _linear_params(keys[4], 1, inv_hidden)
    li_w2, li_b2 = _linear_params(keys[5], inv_hidden, 2)
    wm_w1, wm_b1 = _linear_params(keys[6], 4, map_hidden)
    wm_w2, wm_b2 = _linear_params(keys[7], map_hidden, latent)
    ws_w1, ws_b1 = _linear_params(keys[8], latent, wnet_hidden)
    ws_w2, ws_b2 = _linear_params(keys[9], wnet_hidden, wnet_hidden)
    ws_w3, ws_b3 = _linear_params(keys[10], wnet_hidden, 2)

    # PyTorch-default BatchNorm1d stats (gamma=1, beta=0, mean=0, var=1), eval mode, folded in.
    # TODO(synk): training-mode BatchNorm (batch statistics) has no clean per-row Pallas mapping here.
    ones = jnp.ones((wnet_hidden,), jnp.float32)
    zeros = jnp.zeros((wnet_hidden,), jnp.float32)
    ws_w1, ws_b1 = _fold_bn(ws_w1, ws_b1, ones, zeros, zeros, ones)
    ws_w2, ws_b2 = _fold_bn(ws_w2, ws_b2, ones, zeros, zeros, ones)

    return (gm_w1, gm_b1, gm_w2, gm_b2,
            gc_w1, gc_b1, gc_w2, gc_b2,
            li_w1, li_b1, li_w2, li_b2,
            wm_w1, wm_b1, wm_w2, wm_b2,
            ws_w1, ws_b1, ws_w2, ws_b2, ws_w3, ws_b3)


# ------------------------- pure-JAX f32 reference (for a sanity check) -------------------------

def _softmax_ref(v):
    m = jnp.max(v, axis=-1, keepdims=True)
    e = jnp.exp(v - m)
    return e / jnp.sum(e, axis=-1, keepdims=True)


def reference_forward(x, params):
    (gm_w1, gm_b1, gm_w2, gm_b2,
     gc_w1, gc_b1, gc_w2, gc_b2,
     li_w1, li_b1, li_w2, li_b2,
     wm_w1, wm_b1, wm_w2, wm_b2,
     ws_w1, ws_b1, ws_w2, ws_b2, ws_w3, ws_b3) = params
    B, P, F = x.shape
    xf = x.reshape(B * P, F)

    def pmap(w1, b1, w2, b2):
        h = jnp.maximum(xf @ w1 + b1, 0.0)
        h = jnp.maximum(h @ w2 + b2, 0.0)
        return jnp.sum(h.reshape(B, P, -1), axis=1)

    lat_g = pmap(gm_w1, gm_b1, gm_w2, gm_b2)
    h = jnp.maximum(lat_g @ gc_w1 + gc_b1, 0.0)
    general = _softmax_ref(h @ gc_w2 + gc_b2)

    tot = jnp.sum(x, axis=1)
    m2 = tot[:, 0:1] ** 2 - tot[:, 1:2] ** 2 - tot[:, 2:3] ** 2 - tot[:, 3:4] ** 2
    h = jnp.maximum(m2 @ li_w1 + li_b1, 0.0)
    invariant = _softmax_ref(h @ li_w2 + li_b2)

    lat_w = pmap(wm_w1, wm_b1, wm_w2, wm_b2)
    h = jnp.maximum(lat_w @ ws_w1 + ws_b1, 0.0)
    h = jnp.maximum(h @ ws_w2 + ws_b2, 0.0)
    w = _softmax_ref(h @ ws_w3 + ws_b3)
    return general * w[:, 0:1] + invariant * w[:, 1:2]


if __name__ == "__main__":
    key = jax.random.PRNGKey(0)
    k_x, k_p = jax.random.split(key)

    B, P, F = 2, 8, 4                     # batch, particles, four-momentum features
    x = jax.random.normal(k_x, (B, P, F), jnp.float32)
    params = make_params(k_p, latent=32, map_hidden=32, clf_hidden=32,
                         inv_hidden=32, wnet_hidden=32)

    out = hybrid_classifier(x, params)
    out = jax.block_until_ready(out)
    assert out.shape == (B, 2) and out.dtype == jnp.float32

    ref = reference_forward(x, params)
    # Tolerance covers the deliberate numerics deviations: bf16 MXU operands (f32 accumulate)
    # and the EUP approx reciprocal in the softmax denominators.
    assert jnp.allclose(out, ref, rtol=2e-2, atol=2e-2), (out, ref)
    print("KERNEL_OK")
</pallas_src>

<mosaic_0001>
module attributes {stable_mosaic.version = 11 : i64} {
  func.func @hybrid_kernel(%arg0: i32, %arg1: memref<8x32xf32, #tpu.memory_space<vmem>>, %arg2: memref<33x512xbf16, #tpu.memory_space<vmem>>, %arg3: memref<513x512xbf16, #tpu.memory_space<vmem>>, %arg4: memref<513x96xbf16, #tpu.memory_space<vmem>>, %arg5: memref<1x96xf32, #tpu.memory_space<vmem>>, %arg6: memref<97x36xbf16, #tpu.memory_space<vmem>>, %arg7: memref<33x2xbf16, #tpu.memory_space<vmem>>, %arg8: memref<8x2xf32, #tpu.memory_space<vmem>>) attributes {dimension_semantics = [#tpu.dimension_semantics<parallel>], iteration_bounds = array<i64: 1>, scalar_prefetch = 0 : i64, scratch_operands = 0 : i64, tpu.core_type = #tpu.core_type<tc>, window_params = [{transform_indices = @transform_0, window_bounds = array<i64: 8, 32>}, {pipeline_mode = #tpu.pipeline_mode<synchronous>, transform_indices = @transform_1, window_bounds = array<i64: 33, 512>}, {pipeline_mode = #tpu.pipeline_mode<synchronous>, transform_indices = @transform_2, window_bounds = array<i64: 513, 512>}, {pipeline_mode = #tpu.pipeline_mode<synchronous>, transform_indices = @transform_3, window_bounds = array<i64: 513, 96>}, {pipeline_mode = #tpu.pipeline_mode<synchronous>, transform_indices = @transform_4, window_bounds = array<i64: 1, 96>}, {pipeline_mode = #tpu.pipeline_mode<synchronous>, transform_indices = @transform_5, window_bounds = array<i64: 97, 36>}, {pipeline_mode = #tpu.pipeline_mode<synchronous>, transform_indices = @transform_6, window_bounds = array<i64: 33, 2>}, {transform_indices = @transform_7, window_bounds = array<i64: 8, 2>}]} {
    %c0 = arith.constant 0 : index
    %c0_0 = arith.constant 0 : index
    %0 = vector.load %arg1[%c0, %c0_0] : memref<8x32xf32, #tpu.memory_space<vmem>>, vector<8x32xf32>
    %1 = arith.truncf %0 : vector<8x32xf32> to vector<8x32xbf16>
    %c0_1 = arith.constant 0 : index
    %c0_2 = arith.constant 0 : index
    %2 = vector.load %arg2[%c0_1, %c0_2] : memref<33x512xbf16, #tpu.memory_space<vmem>>, vector<32x512xbf16>
    %cst = arith.constant dense<0.000000e+00> : vector<8x512xf32>
    %3 = tpu.matmul %1, %2, %cst {dimension_numbers = #tpu.dot_dimension_numbers<[1], [0], [0], [1], [0, 0, 1, 1], [], []>} : vector<8x32xbf16>, vector<32x512xbf16>, vector<8x512xf32> -> vector<8x512xf32>
    %c32 = arith.constant 32 : index
    %c0_3 = arith.constant 0 : index
    %4 = vector.load %arg2[%c32, %c0_3] : memref<33x512xbf16, #tpu.memory_space<vmem>>, vector<1x512xbf16>
    %5 = arith.extf %4 : vector<1x512xbf16> to vector<1x512xf32>
    %6 = vector.broadcast %5 : vector<1x512xf32> to vector<8x512xf32>
    %7 = arith.addf %3, %6 : vector<8x512xf32>
    %cst_4 = arith.constant 0.000000e+00 : f32
    %8 = vector.broadcast %cst_4 : f32 to vector<8x512xf32>
    %9 = arith.maximumf %7, %8 : vector<8x512xf32>
    %10 = arith.truncf %9 : vector<8x512xf32> to vector<8x512xbf16>
    %c0_5 = arith.constant 0 : index
    %c0_6 = arith.constant 0 : index
    %11 = vector.load %arg3[%c0_5, %c0_6] : memref<513x512xbf16, #tpu.memory_space<vmem>>, vector<512x512xbf16>
    %cst_7 = arith.constant dense<0.000000e+00> : vector<8x512xf32>
    %12 = tpu.matmul %10, %11, %cst_7 {dimension_numbers = #tpu.dot_dimension_numbers<[1], [0], [0], [1], [0, 0, 1, 1], [], []>} : vector<8x512xbf16>, vector<512x512xbf16>, vector<8x512xf32> -> vector<8x512xf32>
    %c512 = arith.constant 512 : index
    %c0_8 = arith.constant 0 : index
    %13 = vector.load %arg3[%c512, %c0_8] : memref<513x512xbf16, #tpu.memory_space<vmem>>, vector<1x512xbf16>
    %14 = arith.extf %13 : vector<1x512xbf16> to vector<1x512xf32>
    %15 = vector.broadcast %14 : vector<1x512xf32> to vector<8x512xf32>
    %16 = arith.addf %12, %15 : vector<8x512xf32>
    %cst_9 = arith.constant 0.000000e+00 : f32
    %17 = vector.broadcast %cst_9 : f32 to vector<8x512xf32>
    %18 = arith.maximumf %16, %17 : vector<8x512xf32>
    %19 = vector.extract_strided_slice %0 {offsets = [0, 0], sizes = [8, 4], strides = [1, 1]} : vector<8x32xf32> to vector<8x4xf32>
    %20 = vector.extract_strided_slice %0 {offsets = [0, 4], sizes = [8, 4], strides = [1, 1]} : vector<8x32xf32> to vector<8x4xf32>
    %21 = arith.addf %19, %20 : vector<8x4xf32>
    %22 = vector.extract_strided_slice %0 {offsets = [0, 8], sizes = [8, 4], strides = [1, 1]} : vector<8x32xf32> to vector<8x4xf32>
    %23 = arith.addf %21, %22 : vector<8x4xf32>
    %24 = vector.extract_strided_slice %0 {offsets = [0, 12], sizes = [8, 4], strides = [1, 1]} : vector<8x32xf32> to vector<8x4xf32>
    %25 = arith.addf %23, %24 : vector<8x4xf32>
    %26 = vector.extract_strided_slice %0 {offsets = [0, 16], sizes = [8, 4], strides = [1, 1]} : vector<8x32xf32> to vector<8x4xf32>
    %27 = arith.addf %25, %26 : vector<8x4xf32>
    %28 = vector.extract_strided_slice %0 {offsets = [0, 20], sizes = [8, 4], strides = [1, 1]} : vector<8x32xf32> to vector<8x4xf32>
    %29 = arith.addf %27, %28 : vector<8x4xf32>
    %30 = vector.extract_strided_slice %0 {offsets = [0, 24], sizes = [8, 4], strides = [1, 1]} : vector<8x32xf32> to vector<8x4xf32>
    %31 = arith.addf %29, %30 : vector<8x4xf32>
    %32 = vector.extract_strided_slice %0 {offsets = [0, 28], sizes = [8, 4], strides = [1, 1]} : vector<8x32xf32> to vector<8x4xf32>
    %33 = arith.addf %31, %32 : vector<8x4xf32>
    %34 = vector.extract_strided_slice %33 {offsets = [0, 0], sizes = [8, 1], strides = [1, 1]} : vector<8x4xf32> to vector<8x1xf32>
    %35 = vector.extract_strided_slice %33 {offsets = [0, 0], sizes = [8, 1], strides = [1, 1]} : vector<8x4xf32> to vector<8x1xf32>
    %36 = arith.mulf %34, %35 : vector<8x1xf32>
    %37 = vector.extract_strided_slice %33 {offsets = [0, 1], sizes = [8, 1], strides = [1, 1]} : vector<8x4xf32> to vector<8x1xf32>
    %38 = vector.extract_strided_slice %33 {offsets = [0, 1], sizes = [8, 1], strides = [1, 1]} : vector<8x4xf32> to vector<8x1xf32>
    %39 = arith.mulf %37, %38 : vector<8x1xf32>
    %40 = arith.subf %36, %39 : vector<8x1xf32>
    %41 = vector.extract_strided_slice %33 {offsets = [0, 2], sizes = [8, 1], strides = [1, 1]} : vector<8x4xf32> to vector<8x1xf32>
    %42 = vector.extract_strided_slice %33 {offsets = [0, 2], sizes = [8, 1], strides = [1, 1]} : vector<8x4xf32> to vector<8x1xf32>
    %43 = arith.mulf %41, %42 : vector<8x1xf32>
    %44 = arith.subf %40, %43 : vector<8x1xf32>
    %45 = vector.extract_strided_slice %33 {offsets = [0, 3], sizes = [8, 1], strides = [1, 1]} : vector<8x4xf32> to vector<8x1xf32>
    %46 = vector.extract_strided_slice %33 {offsets = [0, 3], sizes = [8, 1], strides = [1, 1]} : vector<8x4xf32> to vector<8x1xf32>
    %47 = arith.mulf %45, %46 : vector<8x1xf32>
    %48 = arith.subf %44, %47 : vector<8x1xf32>
    %49 = arith.truncf %18 : vector<8x512xf32> to vector<8x512xbf16>
    %c0_10 = arith.constant 0 : index
    %c0_11 = arith.constant 0 : index
    %50 = vector.load %arg4[%c0_10, %c0_11] : memref<513x96xbf16, #tpu.memory_space<vmem>>, vector<512x96xbf16>
    %cst_12 = arith.constant dense<0.000000e+00> : vector<8x96xf32>
    %51 = tpu.matmul %49, %50, %cst_12 {dimension_numbers = #tpu.dot_dimension_numbers<[1], [0], [0], [1], [0, 0, 1, 1], [], []>} : vector<8x512xbf16>, vector<512x96xbf16>, vector<8x96xf32> -> vector<8x96xf32>
    %c512_13 = arith.constant 512 : index
    %c0_14 = arith.constant 0 : index
    %52 = vector.load %arg4[%c512_13, %c0_14] : memref<513x96xbf16, #tpu.memory_space<vmem>>, vector<1x96xbf16>
    %53 = arith.extf %52 : vector<1x96xbf16> to vector<1x96xf32>
    %54 = vector.broadcast %53 : vector<1x96xf32> to vector<8x96xf32>
    %55 = arith.addf %51, %54 : vector<8x96xf32>
    %c0_15 = arith.constant 0 : index
    %c0_16 = arith.constant 0 : index
    %56 = vector.load %arg5[%c0_15, %c0_16] : memref<1x96xf32, #tpu.memory_space<vmem>>, vector<1x96xf32>
    %57 = vector.broadcast %48 : vector<8x1xf32> to vector<8x96xf32>
    %58 = vector.broadcast %56 : vector<1x96xf32> to vector<8x96xf32>
    %59 = arith.mulf %57, %58 : vector<8x96xf32>
    %60 = arith.addf %55, %59 : vector<8x96xf32>
    %cst_17 = arith.constant 0.000000e+00 : f32
    %61 = vector.broadcast %cst_17 : f32 to vector<8x96xf32>
    %62 = arith.maximumf %60, %61 : vector<8x96xf32>
    %63 = arith.truncf %62 : vector<8x96xf32> to vector<8x96xbf16>
    %c0_18 = arith.constant 0 : index
    %c0_19 = arith.constant 0 : index
    %64 = vector.load %arg6[%c0_18, %c0_19] : memref<97x36xbf16, #tpu.memory_space<vmem>>, vector<96x36xbf16>
    %cst_20 = arith.constant dense<0.000000e+00> : vector<8x36xf32>
    %65 = tpu.matmul %63, %64, %cst_20 {dimension_numbers = #tpu.dot_dimension_numbers<[1], [0], [0], [1], [0, 0, 1, 1], [], []>} : vector<8x96xbf16>, vector<96x36xbf16>, vector<8x36xf32> -> vector<8x36xf32>
    %c96 = arith.constant 96 : index
    %c0_21 = arith.constant 0 : index
    %66 = vector.load %arg6[%c96, %c0_21] : memref<97x36xbf16, #tpu.memory_space<vmem>>, vector<1x36xbf16>
    %67 = arith.extf %66 : vector<1x36xbf16> to vector<1x36xf32>
    %68 = vector.broadcast %67 : vector<1x36xf32> to vector<8x36xf32>
    %69 = arith.addf %65, %68 : vector<8x36xf32>
    %70 = vector.extract_strided_slice %69 {offsets = [0, 0], sizes = [8, 32], strides = [1, 1]} : vector<8x36xf32> to vector<8x32xf32>
    %cst_22 = arith.constant 0.000000e+00 : f32
    %71 = vector.broadcast %cst_22 : f32 to vector<8x32xf32>
    %72 = arith.maximumf %70, %71 : vector<8x32xf32>
    %73 = vector.extract_strided_slice %69 {offsets = [0, 32], sizes = [8, 2], strides = [1, 1]} : vector<8x36xf32> to vector<8x2xf32>
    %cst_23 = arith.constant dense<0xFF800000> : vector<8xf32>
    %74 = vector.multi_reduction <maximumf>, %73, %cst_23 [1] : vector<8x2xf32> to vector<8xf32>
    %75 = vector.shape_cast %74 : vector<8xf32> to vector<8x1xf32>
    %76 = vector.broadcast %75 : vector<8x1xf32> to vector<8x2xf32>
    %77 = arith.subf %73, %76 : vector<8x2xf32>
    %78 = math.exp %77 : vector<8x2xf32>
    %cst_24 = arith.constant dense<0.000000e+00> : vector<8xf32>
    %79 = vector.multi_reduction <add>, %78, %cst_24 [1] : vector<8x2xf32> to vector<8xf32>
    %80 = vector.shape_cast %79 : vector<8xf32> to vector<8x1xf32>
    %81 = tpu.reciprocal %80 {approx = true} : vector<8x1xf32> -> vector<8x1xf32>
    %82 = vector.broadcast %81 : vector<8x1xf32> to vector<8x2xf32>
    %83 = arith.mulf %78, %82 : vector<8x2xf32>
    %84 = vector.extract_strided_slice %69 {offsets = [0, 34], sizes = [8, 2], strides = [1, 1]} : vector<8x36xf32> to vector<8x2xf32>
    %cst_25 = arith.constant dense<0xFF800000> : vector<8xf32>
    %85 = vector.multi_reduction <maximumf>, %84, %cst_25 [1] : vector<8x2xf32> to vector<8xf32>
    %86 = vector.shape_cast %85 : vector<8xf32> to vector<8x1xf32>
    %87 = vector.broadcast %86 : vector<8x1xf32> to vector<8x2xf32>
    %88 = arith.subf %84, %87 : vector<8x2xf32>
    %89 = math.exp %88 : vector<8x2xf32>
    %cst_26 = arith.constant dense<0.000000e+00> : vector<8xf32>
    %90 = vector.multi_reduction <add>, %89, %cst_26 [1] : vector<8x2xf32> to vector<8xf32>
    %91 = vector.shape_cast %90 : vector<8xf32> to vector<8x1xf32>
    %92 = tpu.reciprocal %91 {approx = true} : vector<8x1xf32> -> vector<8x1xf32>
    %93 = vector.broadcast %92 : vector<8x1xf32> to vector<8x2xf32>
    %94 = arith.mulf %89, %93 : vector<8x2xf32>
    %95 = arith.truncf %72 : vector<8x32xf32> to vector<8x32xbf16>
    %c0_27 = arith.constant 0 : index
    %c0_28 = arith.constant 0 : index
    %96 = vector.load %arg7[%c0_27, %c0_28] : memref<33x2xbf16, #tpu.memory_space<vmem>>, vector<32x2xbf16>
    %cst_29 = arith.constant dense<0.000000e+00> : vector<8x2xf32>
    %97 = tpu.matmul %95, %96, %cst_29 {dimension_numbers = #tpu.dot_dimension_numbers<[1], [0], [0], [1], [0, 0, 1, 1], [], []>} : vector<8x32xbf16>, vector<32x2xbf16>, vector<8x2xf32> -> vector<8x2xf32>
    %c32_30 = arith.constant 32 : index
    %c0_31 = arith.constant 0 : index
    %98 = vector.load %arg7[%c32_30, %c0_31] : memref<33x2xbf16, #tpu.memory_space<vmem>>, vector<1x2xbf16>
    %99 = arith.extf %98 : vector<1x2xbf16> to vector<1x2xf32>
    %100 = vector.broadcast %99 : vector<1x2xf32> to vector<8x2xf32>
    %101 = arith.addf %97, %100 : vector<8x2xf32>
    %cst_32 = arith.constant dense<0xFF800000> : vector<8xf32>
    %102 = vector.multi_reduction <maximumf>, %101, %cst_32 [1] : vector<8x2xf32> to vector<8xf32>
    %103 = vector.shape_cast %102 : vector<8xf32> to vector<8x1xf32>
    %104 = vector.broadcast %103 : vector<8x1xf32> to vector<8x2xf32>
    %105 = arith.subf %101, %104 : vector<8x2xf32>
    %106 = math.exp %105 : vector<8x2xf32>
    %cst_33 = arith.constant dense<0.000000e+00> : vector<8xf32>
    %107 = vector.multi_reduction <add>, %106, %cst_33 [1] : vector<8x2xf32> to vector<8xf32>
    %108 = vector.shape_cast %107 : vector<8xf32> to vector<8x1xf32>
    %109 = tpu.reciprocal %108 {approx = true} : vector<8x1xf32> -> vector<8x1xf32>
    %110 = vector.broadcast %109 : vector<8x1xf32> to vector<8x2xf32>
    %111 = arith.mulf %106, %110 : vector<8x2xf32>
    %112 = vector.extract_strided_slice %111 {offsets = [0, 0], sizes = [8, 1], strides = [1, 1]} : vector<8x2xf32> to vector<8x1xf32>
    %113 = vector.broadcast %112 : vector<8x1xf32> to vector<8x2xf32>
    %114 = arith.mulf %83, %113 : vector<8x2xf32>
    %115 = vector.extract_strided_slice %111 {offsets = [0, 1], sizes = [8, 1], strides = [1, 1]} : vector<8x2xf32> to vector<8x1xf32>
    %116 = vector.broadcast %115 : vector<8x1xf32> to vector<8x2xf32>
    %117 = arith.mulf %94, %116 : vector<8x2xf32>
    %118 = arith.addf %114, %117 : vector<8x2xf32>
    %c0_34 = arith.constant 0 : index
    %c0_35 = arith.constant 0 : index
    %119 = vector.load %arg8[%c0_34, %c0_35] : memref<8x2xf32, #tpu.memory_space<vmem>>, vector<8x2xf32>
    tpu.vector_store %arg8[%c0_34, %c0_35], %118 {strides = array<i32>} : memref<8x2xf32, #tpu.memory_space<vmem>>, vector<8x2xf32>,
    return
  }
  func.func @transform_0(%arg0: i32) -> (i32, i32) {
    %c0_i32 = arith.constant 0 : i32
    %c0_i32_0 = arith.constant 0 : i32
    return %arg0, %c0_i32 : i32, i32
  }
  func.func @transform_1(%arg0: i32) -> (i32, i32) {
    %c0_i32 = arith.constant 0 : i32
    %c0_i32_0 = arith.constant 0 : i32
    %c0_i32_1 = arith.constant 0 : i32
    return %c0_i32, %c0_i32_0 : i32, i32
  }
  func.func @transform_2(%arg0: i32) -> (i32, i32) {
    %c0_i32 = arith.constant 0 : i32
    %c0_i32_0 = arith.constant 0 : i32
    %c0_i32_1 = arith.constant 0 : i32
    return %c0_i32, %c0_i32_0 : i32, i32
  }
  func.func @transform_3(%arg0: i32) -> (i32, i32) {
    %c0_i32 = arith.constant 0 : i32
    %c0_i32_0 = arith.constant 0 : i32
    %c0_i32_1 = arith.constant 0 : i32
    return %c0_i32, %c0_i32_0 : i32, i32
  }
  func.func @transform_4(%arg0: i32) -> (i32, i32) {
    %c0_i32 = arith.constant 0 : i32
    %c0_i32_0 = arith.constant 0 : i32
    %c0_i32_1 = arith.constant 0 : i32
    return %c0_i32, %c0_i32_0 : i32, i32
  }
  func.func @transform_5(%arg0: i32) -> (i32, i32) {
    %c0_i32 = arith.constant 0 : i32
    %c0_i32_0 = arith.constant 0 : i32
    %c0_i32_1 = arith.constant 0 : i32
    return %c0_i32, %c0_i32_0 : i32, i32
  }
  func.func @transform_6(%arg0: i32) -> (i32, i32) {
    %c0_i32 = arith.constant 0 : i32
    %c0_i32_0 = arith.constant 0 : i32
    %c0_i32_1 = arith.constant 0 : i32
    return %c0_i32, %c0_i32_0 : i32, i32
  }
  func.func @transform_7(%arg0: i32) -> (i32, i32) {
    %c0_i32 = arith.constant 0 : i32
    %c0_i32_0 = arith.constant 0 : i32
    return %arg0, %c0_i32 : i32, i32
  }
}

</mosaic_0001>

<llo_original>
// kernel: tpu_custom_call.1
$region0: #{tpu_custom_call.1}
  #allocation0 [shape = 'u32[]', space=smem, size = 0x4, offset = 0x4, fixed_abs, tag = 'smem constant byte address 0x4 - core index']
  #allocation1 [shape = 'u32[72,128]{1,0:T(1,128)}', space=vmem, size = 0x9000, scoped, tag = 'internal scratch']
  %s0 = inlined_call_operand.vmem [shape: f32[8,32], index: 0, kind: input, shape index: {}]
  %s1 = inlined_call_operand.vmem [shape: bf16[33,512], index: 1, kind: input, shape index: {}]
  %s2 = inlined_call_operand.hbm [shape: bf16[513,512], index: 2, kind: input, shape index: {}]
  %s3 = inlined_call_operand.vmem [shape: bf16[513,96], index: 3, kind: input, shape index: {}]
  %s4 = inlined_call_operand.vmem [shape: f32[1,96], index: 4, kind: input, shape index: {}]
  %s5 = inlined_call_operand.vmem [shape: bf16[97,36], index: 5, kind: input, shape index: {}]
  %s6 = inlined_call_operand.vmem [shape: bf16[33,2], index: 6, kind: input, shape index: {}]
  %s7 = inlined_call_operand.vmem [shape: f32[8,2], index: 7, kind: output, shape index: {}]
  %s8 = sld [smem:[#allocation0]]
  $region42: #{tpu_custom_call.1} parent=0
    _
  %s10 = ssub.s32 1, %s8
  %s11 = scalar_select 0, %s10, %s8
  $region1: #{tpu_custom_call.1} parent=0
    #allocation2 [shape = 'u8[532480]{0}', space=vmem, size = 0x82000, scoped, tag = 'input window, operand 2, single buffered']
    #allocation3 [shape = 's32[1]{0}', space=sflag, size = 0x4, scoped, tag = 'scoped memory for tpu_custom_call.1']
    %12 = vsyncpa [#allocation3], 0
    // Predicated region
    $region2: #{tpu_custom_call.1} parent=1 // pred_check
      _
    $region3: #{tpu_custom_call.1} parent=1 // pred_check_branch
      %14 = sbr.rel (0) target = $region5
    $region4: #{tpu_custom_call.1} parent=1 // pred_region
      _
    $region5: #{tpu_custom_call.1} parent=1 // pred_fallthru
      _
    // Predicated region
    $region6: #{tpu_custom_call.1} parent=1 // pred_check
      _
    $region7: #{tpu_custom_call.1} parent=1 // pred_check_branch
      %16 = sbr.rel (0) target = $region9
    $region8: #{tpu_custom_call.1} parent=1 // pred_region
      _
    $region9: #{tpu_custom_call.1} parent=1 // pred_fallthru
      _
    // Predicated region
    $region10: #{tpu_custom_call.1} parent=1 // pred_check
      _
    $region11: #{tpu_custom_call.1} parent=1 // pred_check_branch
      %18 = sbr.rel (0) target = $region13
    $region12: #{tpu_custom_call.1} parent=1 // pred_region
      %20 = vsyncadd [#allocation3], 0
      %s21 = sshll.u32 %s2, 4
      %s22 = int_to_ptr.hbm [resolvable:$true] %s21
      %s23 = sshll.u32 [#allocation2], 4
      %s24 = int_to_ptr.vmem [resolvable:$true] %s23
      %29 = dma.hbm_to_vmem [thread:$0]  %s22, 16640, %s24, [#allocation3], 256, 256, 16
    $region13: #{tpu_custom_call.1} parent=1 // pred_fallthru
      _
    // Predicated region
    $region14: #{tpu_custom_call.1} parent=1 // pred_check
      _
    $region15: #{tpu_custom_call.1} parent=1 // pred_check_branch
      %31 = sbr.rel (0) target = $region17
    $region16: #{tpu_custom_call.1} parent=1 // pred_region
      _
    $region17: #{tpu_custom_call.1} parent=1 // pred_fallthru
      _
    // Predicated region
    $region18: #{tpu_custom_call.1} parent=1 // pred_check
      _
    $region19: #{tpu_custom_call.1} parent=1 // pred_check_branch
      %33 = sbr.rel (0) target = $region21
    $region20: #{tpu_custom_call.1} parent=1 // pred_region
      _
    $region21: #{tpu_custom_call.1} parent=1 // pred_fallthru
      _
    // Predicated region
    $region22: #{tpu_custom_call.1} parent=1 // pred_check
      _
    $region23: #{tpu_custom_call.1} parent=1 // pred_check_branch
      %35 = sbr.rel (0) target = $region25
    $region24: #{tpu_custom_call.1} parent=1 // pred_region
      _
    $region25: #{tpu_custom_call.1} parent=1 // pred_fallthru
      _
    // Predicated region
    $region26: #{tpu_custom_call.1} parent=1 // pred_check
      _
    $region27: #{tpu_custom_call.1} parent=1 // pred_check_branch
      %37 = sbr.rel (0) target = $region29
    $region28: #{tpu_custom_call.1} parent=1 // pred_region
      _
    $region29: #{tpu_custom_call.1} parent=1 // pred_fallthru
      _
    // Predicated region
    $region30: #{tpu_custom_call.1} parent=1 // pred_check
      _
    $region31: #{tpu_custom_call.1} parent=1 // pred_check_branch
      %39 = sbr.rel (0) target = $region33
    $region32: #{tpu_custom_call.1} parent=1 // pred_region
      %41 = dma.done [#allocation3], 16640
    $region33: #{tpu_custom_call.1} parent=1 // pred_fallthru
      _
    %v43 = vld [vmem:[%s0] sm:$0xff]
    %v44 = vpack.c.bf16 %v43, %v43
    %v45 = vld [vmem:[%s1] sm:$0xff]
    %v46 = vld [vmem:[%s1 + $0x8] sm:$0xff]
    %v47 = vld [vmem:[%s1 + $0x10] sm:$0xff]
    %v48 = vld [vmem:[%s1 + $0x18] sm:$0xff]
    %v49 = vld [vmem:[%s1 + $0x20] sm:$0xff]
    %v50 = vld [vmem:[%s1 + $0x28] sm:$0xff]
    %v51 = vld [vmem:[%s1 + $0x30] sm:$0xff]
    %v52 = vld [vmem:[%s1 + $0x38] sm:$0xff]
    %v53 = vld [vmem:[%s1 + $0x40] sm:$0x11]
    %v54 = vld [vmem:[%s1 + $0x48] sm:$0x11]
    %v55 = vunpack.c.l.bf16 %v53
    %v56 = vunpack.c.h.bf16 %v53
    %v57 = vunpack.c.l.bf16 %v54
    %v58 = vunpack.c.h.bf16 %v54
    %v59 = vperm.slane %v55, 0
    %v60 = vperm.slane %v56, 0
    %v61 = vperm.slane %v57, 0
    %v62 = vperm.slane %v58, 0
    %v71 = vunpack.c.l.b16 %v45
    %v72 = vunpack.c.h.b16 %v45
    %v73 = vunpack.c.l.b16 %v46
    %v74 = vunpack.c.h.b16 %v46
    %v75 = vunpack.c.l.b16 %v47
    %v76 = vunpack.c.h.b16 %v47
    %v77 = vunpack.c.l.b16 %v48
    %v78 = vunpack.c.h.b16 %v48
    %v79 = vunpack.c.l.b16 %v49
    %v80 = vunpack.c.h.b16 %v49
    %v81 = vunpack.c.l.b16 %v50
    %v82 = vunpack.c.h.b16 %v50
    %v83 = vunpack.c.l.b16 %v51
    %v84 = vunpack.c.h.b16 %v51
    %v85 = vunpack.c.l.b16 %v52
    %v86 = vunpack.c.h.b16 %v52
    %v87 = vpack.c.b16 %v75, %v71
    %v88 = vpack.c.b16 %v76, %v72
    %v89 = vpack.c.b16 %v77, %v73
    %v90 = vpack.c.b16 %v78, %v74
    %v91 = vpack.c.b16 %v83, %v79
    %v92 = vpack.c.b16 %v84, %v80
    %v93 = vpack.c.b16 %v85, %v81
    %v94 = vpack.c.b16 %v86, %v82
    %vm103 = vcmask 261120
    %v105 = vsel %vm103, %v44, 0
    %107 = vmatpush.bf16.msra.mxu0 0
    %108 = vmatpush.bf16.msra.mxu0 0
    %109 = vmatpush.bf16.msra.mxu0 0
    %110 = vmatpush.bf16.msra.mxu0 0
    %111 = vmatpush.bf16.msra.mxu0 0
    %112 = vmatpush.bf16.msra.mxu0 0
    %113 = vmatpush.bf16.msra.mxu0 %v91
    %114 = vmatpush.bf16.msra.mxu0 %v87
    %115 = vmatmul.bf16.gmra.mxu0 %v105
    %v116 = vpop.f32.mrf.mxu0
    %v117 = vadd.f32 %v59, %v116
    %v118 = vpop.f32.mrf.mxu0
    %119 = vdwg.mxu0
    %120 = vmatpush.bf16.msra.mxu0 0
    %121 = vmatpush.bf16.msra.mxu0 0
    %122 = vmatpush.bf16.msra.mxu0 0
    %123 = vmatpush.bf16.msra.mxu0 0
    %124 = vmatpush.bf16.msra.mxu0 0
    %125 = vmatpush.bf16.msra.mxu0 0
    %126 = vmatpush.bf16.msra.mxu0 %v92
    %127 = vmatpush.bf16.msra.mxu0 %v88
    %128 = vmatmul.bf16.gmra.mxu0 %v105
    %v129 = vpop.f32.mrf.mxu0
    %v130 = vadd.f32 %v60, %v129
    %v131 = vpop.f32.mrf.mxu0
    %132 = vdwg.mxu0
    %133 = vmatpush.bf16.msra.mxu0 0
    %134 = vmatpush.bf16.msra.mxu0 0
    %135 = vmatpush.bf16.msra.mxu0 0
    %136 = vmatpush.bf16.msra.mxu0 0
    %137 = vmatpush.bf16.msra.mxu0 0
    %138 = vmatpush.bf16.msra.mxu0 0
    %139 = vmatpush.bf16.msra.mxu0 %v93
    %140 = vmatpush.bf16.msra.mxu0 %v89
    %141 = vmatmul.bf16.gmra.mxu0 %v105
    %v142 = vpop.f32.mrf.mxu0
    %v143 = vadd.f32 %v61, %v142
    %v144 = vpop.f32.mrf.mxu0
    %145 = vdwg.mxu0
    %146 = vmatpush.bf16.msra.mxu0 0
    %147 = vmatpush.bf16.msra.mxu0 0
    %148 = vmatpush.bf16.msra.mxu0 0
    %149 = vmatpush.bf16.msra.mxu0 0
    %150 = vmatpush.bf16.msra.mxu0 0
    %151 = vmatpush.bf16.msra.mxu0 0
    %152 = vmatpush.bf16.msra.mxu0 %v94
    %153 = vmatpush.bf16.msra.mxu0 %v90
    %154 = vmatmul.bf16.gmra.mxu0 %v105
    %v155 = vpop.f32.mrf.mxu0
    %v156 = vadd.f32 %v62, %v155
    %v157 = vpop.f32.mrf.mxu0
    %158 = vdwg.mxu0
    %v159 = vmax.f32 %v117, 0.0
    %v160 = vmax.f32 %v130, 0.0
    %v161 = vmax.f32 %v143, 0.0
    %v162 = vmax.f32 %v156, 0.0
    %v163 = vpack.c.bf16 %v159, %v159
    %v164 = vpack.c.bf16 %v160, %v160
    %v165 = vpack.c.bf16 %v161, %v161
    %v166 = vpack.c.bf16 %v162, %v162
    %v167 = vld [vmem:[#allocation2] sm:$0xff]
    %v168 = vld [vmem:[#allocation2 + $0x8] sm:$0xff]
    %v169 = vld [vmem:[#allocation2 + $0x10] sm:$0xff]
    %v170 = vld [vmem:[#allocation2 + $0x18] sm:$0xff]
    %v171 = vld [vmem:[#allocation2 + $0x20] sm:$0xff]
    %v172 = vld [vmem:[#allocation2 + $0x28] sm:$0xff]
    %v173 = vld [vmem:[#allocation2 + $0x30] sm:$0xff]
    %v174 = vld [vmem:[#allocation2 + $0x38] sm:$0xff]
    %v175 = vld [vmem:[#allocation2 + $0x40] sm:$0xff]
    %v176 = vld [vmem:[#allocation2 + $0x48] sm:$0xff]
    %v177 = vld [vmem:[#allocation2 + $0x50] sm:$0xff]
    %v178 = vld [vmem:[#allocation2 + $0x58] sm:$0xff]
    %v179 = vld [vmem:[#allocation2 + $0x60] sm:$0xff]
    %v180 = vld [vmem:[#allocation2 + $0x68] sm:$0xff]
    %v181 = vld [vmem:[#allocation2 + $0x70] sm:$0xff]
    %v182 = vld [vmem:[#allocation2 + $0x78] sm:$0xff]
    %v183 = vld [vmem:[#allocation2 + $0x80] sm:$0xff]
    %v184 = vld [vmem:[#allocation2 + $0x88] sm:$0xff]
    %v185 = vld [vmem:[#allocation2 + $0x90] sm:$0xff]
    %v186 = vld [vmem:[#allocation2 + $0x98] sm:$0xff]
    %v187 = vld [vmem:[#allocation2 + $0xa0] sm:$0xff]
    %v188 = vld [vmem:[#allocation2 + $0xa8] sm:$0xff]
    %v189 = vld [vmem:[#allocation2 + $0xb0] sm:$0xff]
    %v190 = vld [vmem:[#allocation2 + $0xb8] sm:$0xff]
    %v191 = vld [vmem:[#allocation2 + $0xc0] sm:$0xff]
    %v192 = vld [vmem:[#allocation2 + $0xc8] sm:$0xff]
    %v193 = vld [vmem:[#allocation2 + $0xd0] sm:$0xff]
    %v194 = vld [vmem:[#allocation2 + $0xd8] sm:$0xff]
    %v195 = vld [vmem:[#allocation2 + $0xe0] sm:$0xff]
    %v196 = vld [vmem:[#allocation2 + $0xe8] sm:$0xff]
    %v197 = vld [vmem:[#allocation2 + $0xf0] sm:$0xff]
    %v198 = vld [vmem:[#allocation2 + $0xf8] sm:$0xff]
    %v199 = vld [vmem:[#allocation2 + $0x100] sm:$0xff]
    %v200 = vld [vmem:[#allocation2 + $0x108] sm:$0xff]
    %v201 = vld [vmem:[#allocation2 + $0x110] sm:$0xff]
    %v202 = vld [vmem:[#allocation2 + $0x118] sm:$0xff]
    %v203 = vld [vmem:[#allocation2 + $0x120] sm:$0xff]
    %v204 = vld [vmem:[#allocation2 + $0x128] sm:$0xff]
    %v205 = vld [vmem:[#allocation2 + $0x130] sm:$0xff]
    %v206 = vld [vmem:[#allocation2 + $0x138] sm:$0xff]
    %v207 = vld [vmem:[#allocation2 + $0x140] sm:$0xff]
    %v208 = vld [vmem:[#allocation2 + $0x148] sm:$0xff]
    %v209 = vld [vmem:[#allocation2 + $0x150] sm:$0xff]
    %v210 = vld [vmem:[#allocation2 + $0x158] sm:$0xff]
    %v211 = vld [vmem:[#allocation2 + $0x160] sm:$0xff]
    %v212 = vld [vmem:[#allocation2 + $0x168] sm:$0xff]
    %v213 = vld [vmem:[#allocation2 + $0x170] sm:$0xff]
    %v214 = vld [vmem:[#allocation2 + $0x178] sm:$0xff]
    %v215 = vld [vmem:[#allocation2 + $0x180] sm:$0xff]
    %v216 = vld [vmem:[#allocation2 + $0x188] sm:$0xff]
    %v217 = vld [vmem:[#allocation2 + $0x190] sm:$0xff]
    %v218 = vld [vmem:[#allocation2 + $0x198] sm:$0xff]
    %v219 = vld [vmem:[#allocation2 + $0x1a0] sm:$0xff]
    %v220 = vld [vmem:[#allocation2 + $0x1a8] sm:$0xff]
    %v221 = vld [vmem:[#allocation2 + $0x1b0] sm:$0xff]
    %v222 = vld [vmem:[#allocation2 + $0x1b8] sm:$0xff]
    %v223 = vld [vmem:[#allocation2 + $0x1c0] sm:$0xff]
    %v224 = vld [vmem:[#allocation2 + $0x1c8] sm:$0xff]
    %v225 = vld [vmem:[#allocation2 + $0x1d0] sm:$0xff]
    %v226 = vld [vmem:[#allocation2 + $0x1d8] sm:$0xff]
    %v227 = vld [vmem:[#allocation2 + $0x1e0] sm:$0xff]
    %v228 = vld [vmem:[#allocation2 + $0x1e8] sm:$0xff]
    %v229 = vld [vmem:[#allocation2 + $0x1f0] sm:$0xff]
    %v230 = vld [vmem:[#allocation2 + $0x1f8] sm:$0xff]
    %v231 = vld [vmem:[#allocation2 + $0x200] sm:$0xff]
    %v232 = vld [vmem:[#allocation2 + $0x208] sm:$0xff]
    %v233 = vld [vmem:[#allocation2 + $0x210] sm:$0xff]
    %v234 = vld [vmem:[#allocation2 + $0x218] sm:$0xff]
    %v235 = vld [vmem:[#allocation2 + $0x220] sm:$0xff]
    %v236 = vld [vmem:[#allocation2 + $0x228] sm:$0xff]
    %v237 = vld [vmem:[#allocation2 + $0x230] sm:$0xff]
    %v238 = vld [vmem:[#allocation2 + $0x238] sm:$0xff]
    %v239 = vld [vmem:[#allocation2 + $0x240] sm:$0xff]
    %v240 = vld [vmem:[#allocation2 + $0x248] sm:$0xff]
    %v241 = vld [vmem:[#allocation2 + $0x250] sm:$0xff]
    %v242 = vld [vmem:[#allocation2 + $0x258] sm:$0xff]
    %v243 = vld [vmem:[#allocation2 + $0x260] sm:$0xff]
    %v244 = vld [vmem:[#allocation2 + $0x268] sm:$0xff]
    %v245 = vld [vmem:[#allocation2 + $0x270] sm:$0xff]
    %v246 = vld [vmem:[#allocation2 + $0x278] sm:$0xff]
    %v247 = vld [vmem:[#allocation2 + $0x280] sm:$0xff]
    %v248 = vld [vmem:[#allocation2 + $0x288] sm:$0xff]
    %v249 = vld [vmem:[#allocation2 + $0x290] sm:$0xff]
    %v250 = vld [vmem:[#allocation2 + $0x298] sm:$0xff]
    %v251 = vld [vmem:[#allocation2 + $0x2a0] sm:$0xff]
    %v252 = vld [vmem:[#allocation2 + $0x2a8] sm:$0xff]
    %v253 = vld [vmem:[#allocation2 + $0x2b0] sm:$0xff]
    %v254 = vld [vmem:[#allocation2 + $0x2b8] sm:$0xff]
    %v255 = vld [vmem:[#allocation2 + $0x2c0] sm:$0xff]
    %v256 = vld [vmem:[#allocation2 + $0x2c8] sm:$0xff]
    %v257 = vld [vmem:[#allocation2 + $0x2d0] sm:$0xff]
    %v258 = vld [vmem:[#allocation2 + $0x2d8] sm:$0xff]
    %v259 = vld [vmem:[#allocation2 + $0x2e0] sm:$0xff]
    %v260 = vld [vmem:[#allocation2 + $0x2e8] sm:$0xff]
    %v261 = vld [vmem:[#allocation2 + $0x2f0] sm:$0xff]
    %v262 = vld [vmem:[#allocation2 + $0x2f8] sm:$0xff]
    %v263 = vld [vmem:[#allocation2 + $0x300] sm:$0xff]
    %v264 = vld [vmem:[#allocation2 + $0x308] sm:$0xff]
    %v265 = vld [vmem:[#allocation2 + $0x310] sm:$0xff]
    %v266 = vld [vmem:[#allocation2 + $0x318] sm:$0xff]
    %v267 = vld [vmem:[#allocation2 + $0x320] sm:$0xff]
    %v268 = vld [vmem:[#allocation2 + $0x328] sm:$0xff]
    %v269 = vld [vmem:[#allocation2 + $0x330] sm:$0xff]
    %v270 = vld [vmem:[#allocation2 + $0x338] sm:$0xff]
    %v271 = vld [vmem:[#allocation2 + $0x340] sm:$0xff]
    %v272 = vld [vmem:[#allocation2 + $0x348] sm:$0xff]
    %v273 = vld [vmem:[#allocation2 + $0x350] sm:$0xff]
    %v274 = vld [vmem:[#allocation2 + $0x358] sm:$0xff]
    %v275 = vld [vmem:[#allocation2 + $0x360] sm:$0xff]
    %v276 = vld [vmem:[#allocation2 + $0x368] sm:$0xff]
    %v277 = vld [vmem:[#allocation2 + $0x370] sm:$0xff]
    %v278 = vld [vmem:[#allocation2 + $0x378] sm:$0xff]
    %v279 = vld [vmem:[#allocation2 + $0x380] sm:$0xff]
    %v280 = vld [vmem:[#allocation2 + $0x388] sm:$0xff]
    %v281 = vld [vmem:[#allocation2 + $0x390] sm:$0xff]
    %v282 = vld [vmem:[#allocation2 + $0x398] sm:$0xff]
    %v283 = vld [vmem:[#allocation2 + $0x3a0] sm:$0xff]
    %v284 = vld [vmem:[#allocation2 + $0x3a8] sm:$0xff]
    %v285 = vld [vmem:[#allocation2 + $0x3b0] sm:$0xff]
    %v286 = vld [vmem:[#allocation2 + $0x3b8] sm:$0xff]
    %v287 = vld [vmem:[#allocation2 + $0x3c0] sm:$0xff]
    %v288 = vld [vmem:[#allocation2 + $0x3c8] sm:$0xff]
    %v289 = vld [vmem:[#allocation2 + $0x3d0] sm:$0xff]
    %v290 = vld [vmem:[#allocation2 + $0x3d8] sm:$0xff]
    %v291 = vld [vmem:[#allocation2 + $0x3e0] sm:$0xff]
    %v292 = vld [vmem:[#allocation2 + $0x3e8] sm:$0xff]
    %v293 = vld [vmem:[#allocation2 + $0x3f0] sm:$0xff]
    %v294 = vld [vmem:[#allocation2 + $0x3f8] sm:$0xff]
    %v295 = vld [vmem:[#allocation2 + $0x400] sm:$0x11]
    %v296 = vld [vmem:[#allocation2 + $0x408] sm:$0x11]
    %v297 = vunpack.c.l.bf16 %v295
    %v298 = vunpack.c.h.bf16 %v295
    %v299 = vunpack.c.l.bf16 %v296
    %v300 = vunpack.c.h.bf16 %v296
    %v301 = vperm.slane %v297, 0
    %v302 = vperm.slane %v298, 0
    %v303 = vperm.slane %v299, 0
    %v304 = vperm.slane %v300, 0
    %v433 = vunpack.c.l.b16 %v167
    %v434 = vunpack.c.h.b16 %v167
    %v435 = vunpack.c.l.b16 %v168
    %v436 = vunpack.c.h.b16 %v168
    %v437 = vunpack.c.l.b16 %v169
    %v438 = vunpack.c.h.b16 %v169
    %v439 = vunpack.c.l.b16 %v170
    %v440 = vunpack.c.h.b16 %v170
    %v441 = vunpack.c.l.b16 %v171
    %v442 = vunpack.c.h.b16 %v171
    %v443 = vunpack.c.l.b16 %v172
    %v444 = vunpack.c.h.b16 %v172
    %v445 = vunpack.c.l.b16 %v173
    %v446 = vunpack.c.h.b16 %v173
    %v447 = vunpack.c.l.b16 %v174
    %v448 = vunpack.c.h.b16 %v174
    %v449 = vunpack.c.l.b16 %v175
    %v450 = vunpack.c.h.b16 %v175
    %v451 = vunpack.c.l.b16 %v176
    %v452 = vunpack.c.h.b16 %v176
    %v453 = vunpack.c.l.b16 %v177
    %v454 = vunpack.c.h.b16 %v177
    %v455 = vunpack.c.l.b16 %v178
    %v456 = vunpack.c.h.b16 %v178
    %v457 = vunpack.c.l.b16 %v179
    %v458 = vunpack.c.h.b16 %v179
    %v459 = vunpack.c.l.b16 %v180
    %v460 = vunpack.c.h.b16 %v180
    %v461 = vunpack.c.l.b16 %v181
    %v462 = vunpack.c.h.b16 %v181
    %v463 = vunpack.c.l.b16 %v182
    %v464 = vunpack.c.h.b16 %v182
    %v465 = vunpack.c.l.b16 %v183
    %v466 = vunpack.c.h.b16 %v183
    %v467 = vunpack.c.l.b16 %v184
    %v468 = vunpack.c.h.b16 %v184
    %v469 = vunpack.c.l.b16 %v185
    %v470 = vunpack.c.h.b16 %v185
    %v471 = vunpack.c.l.b16 %v186
    %v472 = vunpack.c.h.b16 %v186
    %v473 = vunpack.c.l.b16 %v187
    %v474 = vunpack.c.h.b16 %v187
    %v475 = vunpack.c.l.b16 %v188
    %v476 = vunpack.c.h.b16 %v188
    %v477 = vunpack.c.l.b16 %v189
    %v478 = vunpack.c.h.b16 %v189
    %v479 = vunpack.c.l.b16 %v190
    %v480 = vunpack.c.h.b16 %v190
    %v481 = vunpack.c.l.b16 %v191
    %v482 = vunpack.c.h.b16 %v191
    %v483 = vunpack.c.l.b16 %v192
    %v484 = vunpack.c.h.b16 %v192
    %v485 = vunpack.c.l.b16 %v193
    %v486 = vunpack.c.h.b16 %v193
    %v487 = vunpack.c.l.b16 %v194
    %v488 = vunpack.c.h.b16 %v194
    %v489 = vunpack.c.l.b16 %v195
    %v490 = vunpack.c.h.b16 %v195
    %v491 = vunpack.c.l.b16 %v196
    %v492 = vunpack.c.h.b16 %v196
    %v493 = vunpack.c.l.b16 %v197
    %v494 = vunpack.c.h.b16 %v197
    %v495 = vunpack.c.l.b16 %v198
    %v496 = vunpack.c.h.b16 %v198
    %v497 = vunpack.c.l.b16 %v199
    %v498 = vunpack.c.h.b16 %v199
    %v499 = vunpack.c.l.b16 %v200
    %v500 = vunpack.c.h.b16 %v200
    %v501 = vunpack.c.l.b16 %v201
    %v502 = vunpack.c.h.b16 %v201
    %v503 = vunpack.c.l.b16 %v202
    %v504 = vunpack.c.h.b16 %v202
    %v505 = vunpack.c.l.b16 %v203
    %v506 = vunpack.c.h.b16 %v203
    %v507 = vunpack.c.l.b16 %v204
    %v508 = vunpack.c.h.b16 %v204
    %v509 = vunpack.c.l.b16 %v205
    %v510 = vunpack.c.h.b16 %v205
    %v511 = vunpack.c.l.b16 %v206
    %v512 = vunpack.c.h.b16 %v206
    %v513 = vunpack.c.l.b16 %v207
    %v514 = vunpack.c.h.b16 %v207
    %v515 = vunpack.c.l.b16 %v208
    %v516 = vunpack.c.h.b16 %v208
    %v517 = vunpack.c.l.b16 %v209
    %v518 = vunpack.c.h.b16 %v209
    %v519 = vunpack.c.l.b16 %v210
    %v520 = vunpack.c.h.b16 %v210
    %v521 = vunpack.c.l.b16 %v211
    %v522 = vunpack.c.h.b16 %v211
    %v523 = vunpack.c.l.b16 %v212
    %v524 = vunpack.c.h.b16 %v212
    %v525 = vunpack.c.l.b16 %v213
    %v526 = vunpack.c.h.b16 %v213
    %v527 = vunpack.c.l.b16 %v214
    %v528 = vunpack.c.h.b16 %v214
    %v529 = vunpack.c.l.b16 %v215
    %v530 = vunpack.c.h.b16 %v215
    %v531 = vunpack.c.l.b16 %v216
    %v532 = vunpack.c.h.b16 %v216
    %v533 = vunpack.c.l.b16 %v217
    %v534 = vunpack.c.h.b16 %v217
    %v535 = vunpack.c.l.b16 %v218
    %v536 = vunpack.c.h.b16 %v218
    %v537 = vunpack.c.l.b16 %v219
    %v538 = vunpack.c.h.b16 %v219
    %v539 = vunpack.c.l.b16 %v220
    %v540 = vunpack.c.h.b16 %v220
    %v541 = vunpack.c.l.b16 %v221
    %v542 = vunpack.c.h.b16 %v221
    %v543 = vunpack.c.l.b16 %v222
    %v544 = vunpack.c.h.b16 %v222
    %v545 = vunpack.c.l.b16 %v223
    %v546 = vunpack.c.h.b16 %v223
    %v547 = vunpack.c.l.b16 %v224
    %v548 = vunpack.c.h.b16 %v224
    %v549 = vunpack.c.l.b16 %v225
    %v550 = vunpack.c.h.b16 %v225
    %v551 = vunpack.c.l.b16 %v226
    %v552 = vunpack.c.h.b16 %v226
    %v553 = vunpack.c.l.b16 %v227
    %v554 = vunpack.c.h.b16 %v227
    %v555 = vunpack.c.l.b16 %v228
    %v556 = vunpack.c.h.b16 %v228
    %v557 = vunpack.c.l.b16 %v229
    %v558 = vunpack.c.h.b16 %v229
    %v559 = vunpack.c.l.b16 %v230
    %v560 = vunpack.c.h.b16 %v230
    %v561 = vunpack.c.l.b16 %v231
    %v562 = vunpack.c.h.b16 %v231
    %v563 = vunpack.c.l.b16 %v232
    %v564 = vunpack.c.h.b16 %v232
    %v565 = vunpack.c.l.b16 %v233
    %v566 = vunpack.c.h.b16 %v233
    %v567 = vunpack.c.l.b16 %v234
    %v568 = vunpack.c.h.b16 %v234
    %v569 = vunpack.c.l.b16 %v235
    %v570 = vunpack.c.h.b16 %v235
    %v571 = vunpack.c.l.b16 %v236
    %v572 = vunpack.c.h.b16 %v236
    %v573 = vunpack.c.l.b16 %v237
    %v574 = vunpack.c.h.b16 %v237
    %v575 = vunpack.c.l.b16 %v238
    %v576 = vunpack.c.h.b16 %v238
    %v577 = vunpack.c.l.b16 %v239
    %v578 = vunpack.c.h.b16 %v239
    %v579 = vunpack.c.l.b16 %v240
    %v580 = vunpack.c.h.b16 %v240
    %v581 = vunpack.c.l.b16 %v241
    %v582 = vunpack.c.h.b16 %v241
    %v583 = vunpack.c.l.b16 %v242
    %v584 = vunpack.c.h.b16 %v242
    %v585 = vunpack.c.l.b16 %v243
    %v586 = vunpack.c.h.b16 %v243
    %v587 = vunpack.c.l.b16 %v244
    %v588 = vunpack.c.h.b16 %v244
    %v589 = vunpack.c.l.b16 %v245
    %v590 = vunpack.c.h.b16 %v245
    %v591 = vunpack.c.l.b16 %v246
    %v592 = vunpack.c.h.b16 %v246
    %v593 = vunpack.c.l.b16 %v247
    %v594 = vunpack.c.h.b16 %v247
    %v595 = vunpack.c.l.b16 %v248
    %v596 = vunpack.c.h.b16 %v248
    %v597 = vunpack.c.l.b16 %v249
    %v598 = vunpack.c.h.b16 %v249
    %v599 = vunpack.c.l.b16 %v250
    %v600 = vunpack.c.h.b16 %v250
    %v601 = vunpack.c.l.b16 %v251
    %v602 = vunpack.c.h.b16 %v251
    %v603 = vunpack.c.l.b16 %v252
    %v604 = vunpack.c.h.b16 %v252
    %v605 = vunpack.c.l.b16 %v253
    %v606 = vunpack.c.h.b16 %v253
    %v607 = vunpack.c.l.b16 %v254
    %v608 = vunpack.c.h.b16 %v254
    %v609 = vunpack.c.l.b16 %v255
    %v610 = vunpack.c.h.b16 %v255
    %v611 = vunpack.c.l.b16 %v256
    %v612 = vunpack.c.h.b16 %v256
    %v613 = vunpack.c.l.b16 %v257
    %v614 = vunpack.c.h.b16 %v257
    %v615 = vunpack.c.l.b16 %v258
    %v616 = vunpack.c.h.b16 %v258
    %v617 = vunpack.c.l.b16 %v259
    %v618 = vunpack.c.h.b16 %v259
    %v619 = vunpack.c.l.b16 %v260
    %v620 = vunpack.c.h.b16 %v260
    %v621 = vunpack.c.l.b16 %v261
    %v622 = vunpack.c.h.b16 %v261
    %v623 = vunpack.c.l.b16 %v262
    %v624 = vunpack.c.h.b16 %v262
    %v625 = vunpack.c.l.b16 %v263
    %v626 = vunpack.c.h.b16 %v263
    %v627 = vunpack.c.l.b16 %v264
    %v628 = vunpack.c.h.b16 %v264
    %v629 = vunpack.c.l.b16 %v265
    %v630 = vunpack.c.h.b16 %v265
    %v631 = vunpack.c.l.b16 %v266
    %v632 = vunpack.c.h.b16 %v266
    %v633 = vunpack.c.l.b16 %v267
    %v634 = vunpack.c.h.b16 %v267
    %v635 = vunpack.c.l.b16 %v268
    %v636 = vunpack.c.h.b16 %v268
    %v637 = vunpack.c.l.b16 %v269
    %v638 = vunpack.c.h.b16 %v269
    %v639 = vunpack.c.l.b16 %v270
    %v640 = vunpack.c.h.b16 %v270
    %v641 = vunpack.c.l.b16 %v271
    %v642 = vunpack.c.h.b16 %v271
    %v643 = vunpack.c.l.b16 %v272
    %v644 = vunpack.c.h.b16 %v272
    %v645 = vunpack.c.l.b16 %v273
    %v646 = vunpack.c.h.b16 %v273
    %v647 = vunpack.c.l.b16 %v274
    %v648 = vunpack.c.h.b16 %v274
    %v649 = vunpack.c.l.b16 %v275
    %v650 = vunpack.c.h.b16 %v275
    %v651 = vunpack.c.l.b16 %v276
    %v652 = vunpack.c.h.b16 %v276
    %v653 = vunpack.c.l.b16 %v277
    %v654 = vunpack.c.h.b16 %v277
    %v655 = vunpack.c.l.b16 %v278
    %v656 = vunpack.c.h.b16 %v278
    %v657 = vunpack.c.l.b16 %v279
    %v658 = vunpack.c.h.b16 %v279
    %v659 = vunpack.c.l.b16 %v280
    %v660 = vunpack.c.h.b16 %v280
    %v661 = vunpack.c.l.b16 %v281
    %v662 = vunpack.c.h.b16 %v281
    %v663 = vunpack.c.l.b16 %v282
    %v664 = vunpack.c.h.b16 %v282
    %v665 = vunpack.c.l.b16 %v283
    %v666 = vunpack.c.h.b16 %v283
    %v667 = vunpack.c.l.b16 %v284
    %v668 = vunpack.c.h.b16 %v284
    %v669 = vunpack.c.l.b16 %v285
    %v670 = vunpack.c.h.b16 %v285
    %v671 = vunpack.c.l.b16 %v286
    %v672 = vunpack.c.h.b16 %v286
    %v673 = vunpack.c.l.b16 %v287
    %v674 = vunpack.c.h.b16 %v287
    %v675 = vunpack.c.l.b16 %v288
    %v676 = vunpack.c.h.b16 %v288
    %v677 = vunpack.c.l.b16 %v289
    %v678 = vunpack.c.h.b16 %v289
    %v679 = vunpack.c.l.b16 %v290
    %v680 = vunpack.c.h.b16 %v290
    %v681 = vunpack.c.l.b16 %v291
    %v682 = vunpack.c.h.b16 %v291
    %v683 = vunpack.c.l.b16 %v292
    %v684 = vunpack.c.h.b16 %v292
    %v685 = vunpack.c.l.b16 %v293
    %v686 = vunpack.c.h.b16 %v293
    %v687 = vunpack.c.l.b16 %v294
    %v688 = vunpack.c.h.b16 %v294
    %v689 = vpack.c.b16 %v437, %v433
    %v690 = vpack.c.b16 %v438, %v434
    %v691 = vpack.c.b16 %v439, %v435
    %v692 = vpack.c.b16 %v440, %v436
    %v693 = vpack.c.b16 %v445, %v441
    %v694 = vpack.c.b16 %v446, %v442
    %v695 = vpack.c.b16 %v447, %v443
    %v696 = vpack.c.b16 %v448, %v444
    %v697 = vpack.c.b16 %v453, %v449
    %v698 = vpack.c.b16 %v454, %v450
    %v699 = vpack.c.b16 %v455, %v451
    %v700 = vpack.c.b16 %v456, %v452
    %v701 = vpack.c.b16 %v461, %v457
    %v702 = vpack.c.b16 %v462, %v458
    %v703 = vpack.c.b16 %v463, %v459
    %v704 = vpack.c.b16 %v464, %v460
    %v705 = vpack.c.b16 %v469, %v465
    %v706 = vpack.c.b16 %v470, %v466
    %v707 = vpack.c.b16 %v471, %v467
    %v708 = vpack.c.b16 %v472, %v468
    %v709 = vpack.c.b16 %v477, %v473
    %v710 = vpack.c.b16 %v478, %v474
    %v711 = vpack.c.b16 %v479, %v475
    %v712 = vpack.c.b16 %v480, %v476
    %v713 = vpack.c.b16 %v485, %v481
    %v714 = vpack.c.b16 %v486, %v482
    %v715 = vpack.c.b16 %v487, %v483
    %v716 = vpack.c.b16 %v488, %v484
    %v717 = vpack.c.b16 %v493, %v489
    %v718 = vpack.c.b16 %v494, %v490
    %v719 = vpack.c.b16 %v495, %v491
    %v720 = vpack.c.b16 %v496, %v492
    %v721 = vpack.c.b16 %v501, %v497
    %v722 = vpack.c.b16 %v502, %v498
    %v723 = vpack.c.b16 %v503, %v499
    %v724 = vpack.c.b16 %v504, %v500
    %v725 = vpack.c.b16 %v509, %v505
    %v726 = vpack.c.b16 %v510, %v506
    %v727 = vpack.c.b16 %v511, %v507
    %v728 = vpack.c.b16 %v512, %v508
    %v729 = vpack.c.b16 %v517, %v513
    %v730 = vpack.c.b16 %v518, %v514
    %v731 = vpack.c.b16 %v519, %v515
    %v732 = vpack.c.b16 %v520, %v516
    %v733 = vpack.c.b16 %v525, %v521
    %v734 = vpack.c.b16 %v526, %v522
    %v735 = vpack.c.b16 %v527, %v523
    %v736 = vpack.c.b16 %v528, %v524
    %v737 = vpack.c.b16 %v533, %v529
    %v738 = vpack.c.b16 %v534, %v530
    %v739 = vpack.c.b16 %v535, %v531
    %v740 = vpack.c.b16 %v536, %v532
    %v741 = vpack.c.b16 %v541, %v537
    %v742 = vpack.c.b16 %v542, %v538
    %v743 = vpack.c.b16 %v543, %v539
    %v744 = vpack.c.b16 %v544, %v540
    %v745 = vpack.c.b16 %v549, %v545
    %v746 = vpack.c.b16 %v550, %v546
    %v747 = vpack.c.b16 %v551, %v547
    %v748 = vpack.c.b16 %v552, %v548
    %v749 = vpack.c.b16 %v557, %v553
    %v750 = vpack.c.b16 %v558, %v554
    %v751 = vpack.c.b16 %v559, %v555
    %v752 = vpack.c.b16 %v560, %v556
    %v753 = vpack.c.b16 %v565, %v561
    %v754 = vpack.c.b16 %v566, %v562
    %v755 = vpack.c.b16 %v567, %v563
    %v756 = vpack.c.b16 %v568, %v564
    %v757 = vpack.c.b16 %v573, %v569
    %v758 = vpack.c.b16 %v574, %v570
    %v759 = vpack.c.b16 %v575, %v571
    %v760 = vpack.c.b16 %v576, %v572
    %v761 = vpack.c.b16 %v581, %v577
    %v762 = vpack.c.b16 %v582, %v578
    %v763 = vpack.c.b16 %v583, %v579
    %v764 = vpack.c.b16 %v584, %v580
    %v765 = vpack.c.b16 %v589, %v585
    %v766 = vpack.c.b16 %v590, %v586
    %v767 = vpack.c.b16 %v591, %v587
    %v768 = vpack.c.b16 %v592, %v588
    %v769 = vpack.c.b16 %v597, %v593
    %v770 = vpack.c.b16 %v598, %v594
    %v771 = vpack.c.b16 %v599, %v595
    %v772 = vpack.c.b16 %v600, %v596
    %v773 = vpack.c.b16 %v605, %v601
    %v774 = vpack.c.b16 %v606, %v602
    %v775 = vpack.c.b16 %v607, %v603
    %v776 = vpack.c.b16 %v608, %v604
    %v777 = vpack.c.b16 %v613, %v609
    %v778 = vpack.c.b16 %v614, %v610
    %v779 = vpack.c.b16 %v615, %v611
    %v780 = vpack.c.b16 %v616, %v612
    %v781 = vpack.c.b16 %v621, %v617
    %v782 = vpack.c.b16 %v622, %v618
    %v783 = vpack.c.b16 %v623, %v619
    %v784 = vpack.c.b16 %v624, %v620
    %v785 = vpack.c.b16 %v629, %v625
    %v786 = vpack.c.b16 %v630, %v626
    %v787 = vpack.c.b16 %v631, %v627
    %v788 = vpack.c.b16 %v632, %v628
    %v789 = vpack.c.b16 %v637, %v633
    %v790 = vpack.c.b16 %v638, %v634
    %v791 = vpack.c.b16 %v639, %v635
    %v792 = vpack.c.b16 %v640, %v636
    %v793 = vpack.c.b16 %v645, %v641
    %v794 = vpack.c.b16 %v646, %v642
    %v795 = vpack.c.b16 %v647, %v643
    %v796 = vpack.c.b16 %v648, %v644
    %v797 = vpack.c.b16 %v653, %v649
    %v798 = vpack.c.b16 %v654, %v650
    %v799 = vpack.c.b16 %v655, %v651
    %v800 = vpack.c.b16 %v656, %v652
    %v801 = vpack.c.b16 %v661, %v657
    %v802 = vpack.c.b16 %v662, %v658
    %v803 = vpack.c.b16 %v663, %v659
    %v804 = vpack.c.b16 %v664, %v660
    %v805 = vpack.c.b16 %v669, %v665
    %v806 = vpack.c.b16 %v670, %v666
    %v807 = vpack.c.b16 %v671, %v667
    %v808 = vpack.c.b16 %v672, %v668
    %v809 = vpack.c.b16 %v677, %v673
    %v810 = vpack.c.b16 %v678, %v674
    %v811 = vpack.c.b16 %v679, %v675
    %v812 = vpack.c.b16 %v680, %v676
    %v813 = vpack.c.b16 %v685, %v681
    %v814 = vpack.c.b16 %v686, %v682
    %v815 = vpack.c.b16 %v687, %v683
    %v816 = vpack.c.b16 %v688, %v684
    %945 = vmatpush.bf16.msra.mxu0 %v717
    %946 = vmatpush.bf16.msra.mxu0 %v713
    %947 = vmatpush.bf16.msra.mxu0 %v709
    %948 = vmatpush.bf16.msra.mxu0 %v705
    %949 = vmatpush.bf16.msra.mxu0 %v701
    %950 = vmatpush.bf16.msra.mxu0 %v697
    %951 = vmatpush.bf16.msra.mxu0 %v693
    %952 = vmatpush.bf16.msra.mxu0 %v689
    %953 = vmatmul.bf16.gmra.mxu0 %v163
    %v954 = vpop.f32.mrf.mxu0
    %v955 = vadd.f32 %v301, %v954
    %v956 = vpop.f32.mrf.mxu0
    %957 = vdwg.mxu0
    %958 = vmatpush.bf16.msra.mxu0 %v749
    %959 = vmatpush.bf16.msra.mxu0 %v745
    %960 = vmatpush.bf16.msra.mxu0 %v741
    %961 = vmatpush.bf16.msra.mxu0 %v737
    %962 = vmatpush.bf16.msra.mxu0 %v733
    %963 = vmatpush.bf16.msra.mxu0 %v729
    %964 = vmatpush.bf16.msra.mxu0 %v725
    %965 = vmatpush.bf16.msra.mxu0 %v721
    %966 = vmatmul.bf16.gmra.mxu0 %v164
    %v967 = vpop.f32.mrf.mxu0
    %v968 = vadd.f32 %v955, %v967
    %v969 = vpop.f32.mrf.mxu0
    %970 = vdwg.mxu0
    %971 = vmatpush.bf16.msra.mxu0 %v781
    %972 = vmatpush.bf16.msra.mxu0 %v777
    %973 = vmatpush.bf16.msra.mxu0 %v773
    %974 = vmatpush.bf16.msra.mxu0 %v769
    %975 = vmatpush.bf16.msra.mxu0 %v765
    %976 = vmatpush.bf16.msra.mxu0 %v761
    %977 = vmatpush.bf16.msra.mxu0 %v757
    %978 = vmatpush.bf16.msra.mxu0 %v753
    %979 = vmatmul.bf16.gmra.mxu0 %v165
    %v980 = vpop.f32.mrf.mxu0
    %v981 = vadd.f32 %v968, %v980
    %v982 = vpop.f32.mrf.mxu0
    %983 = vdwg.mxu0
    %984 = vmatpush.bf16.msra.mxu0 %v813
    %985 = vmatpush.bf16.msra.mxu0 %v809
    %986 = vmatpush.bf16.msra.mxu0 %v805
    %987 = vmatpush.bf16.msra.mxu0 %v801
    %988 = vmatpush.bf16.msra.mxu0 %v797
    %989 = vmatpush.bf16.msra.mxu0 %v793
    %990 = vmatpush.bf16.msra.mxu0 %v789
    %991 = vmatpush.bf16.msra.mxu0 %v785
    %992 = vmatmul.bf16.gmra.mxu0 %v166
    %v993 = vpop.f32.mrf.mxu0
    %v994 = vadd.f32 %v981, %v993
    %v995 = vpop.f32.mrf.mxu0
    %996 = vdwg.mxu0
    %997 = vmatpush.bf16.msra.mxu0 %v718
    %998 = vmatpush.bf16.msra.mxu0 %v714
    %999 = vmatpush.bf16.msra.mxu0 %v710
    %1000 = vmatpush.bf16.msra.mxu0 %v706
    %1001 = vmatpush.bf16.msra.mxu0 %v702
    %1002 = vmatpush.bf16.msra.mxu0 %v698
    %1003 = vmatpush.bf16.msra.mxu0 %v694
    %1004 = vmatpush.bf16.msra.mxu0 %v690
    %1005 = vmatmul.bf16.gmra.mxu0 %v163
    %v1006 = vpop.f32.mrf.mxu0
    %v1007 = vadd.f32 %v302, %v1006
    %v1008 = vpop.f32.mrf.mxu0
    %1009 = vdwg.mxu0
    %1010 = vmatpush.bf16.msra.mxu0 %v750
    %1011 = vmatpush.bf16.msra.mxu0 %v746
    %1012 = vmatpush.bf16.msra.mxu0 %v742
    %1013 = vmatpush.bf16.msra.mxu0 %v738
    %1014 = vmatpush.bf16.msra.mxu0 %v734
    %1015 = vmatpush.bf16.msra.mxu0 %v730
    %1016 = vmatpush.bf16.msra.mxu0 %v726
    %1017 = vmatpush.bf16.msra.mxu0 %v722
    %1018 = vmatmul.bf16.gmra.mxu0 %v164
    %v1019 = vpop.f32.mrf.mxu0
    %v1020 = vadd.f32 %v1007, %v1019
    %v1021 = vpop.f32.mrf.mxu0
    %1022 = vdwg.mxu0
    %1023 = vmatpush.bf16.msra.mxu0 %v782
    %1024 = vmatpush.bf16.msra.mxu0 %v778
    %1025 = vmatpush.bf16.msra.mxu0 %v774
    %1026 = vmatpush.bf16.msra.mxu0 %v770
    %1027 = vmatpush.bf16.msra.mxu0 %v766
    %1028 = vmatpush.bf16.msra.mxu0 %v762
    %1029 = vmatpush.bf16.msra.mxu0 %v758
    %1030 = vmatpush.bf16.msra.mxu0 %v754
    %1031 = vmatmul.bf16.gmra.mxu0 %v165
    %v1032 = vpop.f32.mrf.mxu0
    %v1033 = vadd.f32 %v1020, %v1032
    %v1034 = vpop.f32.mrf.mxu0
    %1035 = vdwg.mxu0
    %1036 = vmatpush.bf16.msra.mxu0 %v814
    %1037 = vmatpush.bf16.msra.mxu0 %v810
    %1038 = vmatpush.bf16.msra.mxu0 %v806
    %1039 = vmatpush.bf16.msra.mxu0 %v802
    %1040 = vmatpush.bf16.msra.mxu0 %v798
    %1041 = vmatpush.bf16.msra.mxu0 %v794
    %1042 = vmatpush.bf16.msra.mxu0 %v790
    %1043 = vmatpush.bf16.msra.mxu0 %v786
    %1044 = vmatmul.bf16.gmra.mxu0 %v166
    %v1045 = vpop.f32.mrf.mxu0
    %v1046 = vadd.f32 %v1033, %v1045
    %v1047 = vpop.f32.mrf.mxu0
    %1048 = vdwg.mxu0
    %1049 = vmatpush.bf16.msra.mxu0 %v719
    %1050 = vmatpush.bf16.msra.mxu0 %v715
    %1051 = vmatpush.bf16.msra.mxu0 %v711
    %1052 = vmatpush.bf16.msra.mxu0 %v707
    %1053 = vmatpush.bf16.msra.mxu0 %v703
    %1054 = vmatpush.bf16.msra.mxu0 %v699
    %1055 = vmatpush.bf16.msra.mxu0 %v695
    %1056 = vmatpush.bf16.msra.mxu0 %v691
    %1057 = vmatmul.bf16.gmra.mxu0 %v163
    %v1058 = vpop.f32.mrf.mxu0
    %v1059 = vadd.f32 %v303, %v1058
    %v1060 = vpop.f32.mrf.mxu0
    %1061 = vdwg.mxu0
    %1062 = vmatpush.bf16.msra.mxu0 %v751
    %1063 = vmatpush.bf16.msra.mxu0 %v747
    %1064 = vmatpush.bf16.msra.mxu0 %v743
    %1065 = vmatpush.bf16.msra.mxu0 %v739
    %1066 = vmatpush.bf16.msra.mxu0 %v735
    %1067 = vmatpush.bf16.msra.mxu0 %v731
    %1068 = vmatpush.bf16.msra.mxu0 %v727
    %1069 = vmatpush.bf16.msra.mxu0 %v723
    %1070 = vmatmul.bf16.gmra.mxu0 %v164
    %v1071 = vpop.f32.mrf.mxu0
    %v1072 = vadd.f32 %v1059, %v1071
    %v1073 = vpop.f32.mrf.mxu0
    %1074 = vdwg.mxu0
    %1075 = vmatpush.bf16.msra.mxu0 %v783
    %1076 = vmatpush.bf16.msra.mxu0 %v779
    %1077 = vmatpush.bf16.msra.mxu0 %v775
    %1078 = vmatpush.bf16.msra.mxu0 %v771
    %1079 = vmatpush.bf16.msra.mxu0 %v767
    %1080 = vmatpush.bf16.msra.mxu0 %v763
    %1081 = vmatpush.bf16.msra.mxu0 %v759
    %1082 = vmatpush.bf16.msra.mxu0 %v755
    %1083 = vmatmul.bf16.gmra.mxu0 %v165
    %v1084 = vpop.f32.mrf.mxu0
    %v1085 = vadd.f32 %v1072, %v1084
    %v1086 = vpop.f32.mrf.mxu0
    %1087 = vdwg.mxu0
    %1088 = vmatpush.bf16.msra.mxu0 %v815
    %1089 = vmatpush.bf16.msra.mxu0 %v811
    %1090 = vmatpush.bf16.msra.mxu0 %v807
    %1091 = vmatpush.bf16.msra.mxu0 %v803
    %1092 = vmatpush.bf16.msra.mxu0 %v799
    %1093 = vmatpush.bf16.msra.mxu0 %v795
    %1094 = vmatpush.bf16.msra.mxu0 %v791
    %1095 = vmatpush.bf16.msra.mxu0 %v787
    %1096 = vmatmul.bf16.gmra.mxu0 %v166
    %v1097 = vpop.f32.mrf.mxu0
    %v1098 = vadd.f32 %v1085, %v1097
    %v1099 = vpop.f32.mrf.mxu0
    %1100 = vdwg.mxu0
    %1101 = vmatpush.bf16.msra.mxu0 %v720
    %1102 = vmatpush.bf16.msra.mxu0 %v716
    %1103 = vmatpush.bf16.msra.mxu0 %v712
    %1104 = vmatpush.bf16.msra.mxu0 %v708
    %1105 = vmatpush.bf16.msra.mxu0 %v704
    %1106 = vmatpush.bf16.msra.mxu0 %v700
    %1107 = vmatpush.bf16.msra.mxu0 %v696
    %1108 = vmatpush.bf16.msra.mxu0 %v692
    %1109 = vmatmul.bf16.gmra.mxu0 %v163
    %v1110 = vpop.f32.mrf.mxu0
    %v1111 = vadd.f32 %v304, %v1110
    %v1112 = vpop.f32.mrf.mxu0
    %1113 = vdwg.mxu0
    %1114 = vmatpush.bf16.msra.mxu0 %v752
    %1115 = vmatpush.bf16.msra.mxu0 %v748
    %1116 = vmatpush.bf16.msra.mxu0 %v744
    %1117 = vmatpush.bf16.msra.mxu0 %v740
    %1118 = vmatpush.bf16.msra.mxu0 %v736
    %1119 = vmatpush.bf16.msra.mxu0 %v732
    %1120 = vmatpush.bf16.msra.mxu0 %v728
    %1121 = vmatpush.bf16.msra.mxu0 %v724
    %1122 = vmatmul.bf16.gmra.mxu0 %v164
    %v1123 = vpop.f32.mrf.mxu0
    %v1124 = vadd.f32 %v1111, %v1123
    %v1125 = vpop.f32.mrf.mxu0
    %1126 = vdwg.mxu0
    %1127 = vmatpush.bf16.msra.mxu0 %v784
    %1128 = vmatpush.bf16.msra.mxu0 %v780
    %1129 = vmatpush.bf16.msra.mxu0 %v776
    %1130 = vmatpush.bf16.msra.mxu0 %v772
    %1131 = vmatpush.bf16.msra.mxu0 %v768
    %1132 = vmatpush.bf16.msra.mxu0 %v764
    %1133 = vmatpush.bf16.msra.mxu0 %v760
    %1134 = vmatpush.bf16.msra.mxu0 %v756
    %1135 = vmatmul.bf16.gmra.mxu0 %v165
    %v1136 = vpop.f32.mrf.mxu0
    %v1137 = vadd.f32 %v1124, %v1136
    %v1138 = vpop.f32.mrf.mxu0
    %1139 = vdwg.mxu0
    %1140 = vmatpush.bf16.msra.mxu0 %v816
    %1141 = vmatpush.bf16.msra.mxu0 %v812
    %1142 = vmatpush.bf16.msra.mxu0 %v808
    %1143 = vmatpush.bf16.msra.mxu0 %v804
    %1144 = vmatpush.bf16.msra.mxu0 %v800
    %1145 = vmatpush.bf16.msra.mxu0 %v796
    %1146 = vmatpush.bf16.msra.mxu0 %v792
    %1147 = vmatpush.bf16.msra.mxu0 %v788
    %1148 = vmatmul.bf16.gmra.mxu0 %v166
    %v1149 = vpop.f32.mrf.mxu0
    %v1150 = vadd.f32 %v1137, %v1149
    %v1151 = vpop.f32.mrf.mxu0
    %1152 = vdwg.mxu0
    %v1153 = vmax.f32 %v994, 0.0
    %v1154 = vmax.f32 %v1046, 0.0
    %v1155 = vmax.f32 %v1098, 0.0
    %v1156 = vmax.f32 %v1150, 0.0
    %1158 = vrot.lane.b32.xlu0 %v43, 124
    %v1159 = vpop.permute.xlu0 %1158
    %v1161 = vadd.f32 %v43, %v1159
    %1162 = vrot.lane.b32.xlu0 %v43, 120
    %v1163 = vpop.permute.xlu0 %1162
    %v1165 = vadd.f32 %v1161, %v1163
    %1166 = vrot.lane.b32.xlu0 %v43, 116
    %v1167 = vpop.permute.xlu0 %1166
    %v1169 = vadd.f32 %v1165, %v1167
    %1170 = vrot.lane.b32.xlu0 %v43, 112
    %v1171 = vpop.permute.xlu0 %1170
    %v1173 = vadd.f32 %v1169, %v1171
    %1174 = vrot.lane.b32.xlu0 %v43, 108
    %v1175 = vpop.permute.xlu0 %1174
    %v1177 = vadd.f32 %v1173, %v1175
    %1178 = vrot.lane.b32.xlu0 %v43, 104
    %v1179 = vpop.permute.xlu0 %1178
    %v1181 = vadd.f32 %v1177, %v1179
    %1182 = vrot.lane.b32.xlu0 %v43, 100
    %v1183 = vpop.permute.xlu0 %1182
    %v1185 = vadd.f32 %v1181, %v1183
    %v1186 = vmul.f32 %v1185, %v1185
    %1188 = vrot.lane.b32.xlu0 %v1186, 127
    %v1189 = vpop.permute.xlu0 %1188
    %v1191 = vsub.f32 %v1186, %v1189
    %1192 = vrot.lane.b32.xlu0 %v1186, 126
    %v1193 = vpop.permute.xlu0 %1192
    %v1195 = vsub.f32 %v1191, %v1193
    %1196 = vrot.lane.b32.xlu0 %v1186, 125
    %v1197 = vpop.permute.xlu0 %1196
    %v1199 = vsub.f32 %v1195, %v1197
    %v1200 = vpack.c.bf16 %v1153, %v1153
    %v1201 = vpack.c.bf16 %v1154, %v1154
    %v1202 = vpack.c.bf16 %v1155, %v1155
    %v1203 = vpack.c.bf16 %v1156, %v1156
    %v1204 = vld [vmem:[%s3] sm:$0xf]
    %v1205 = vld [vmem:[%s3 + $0x4] sm:$0xf]
    %v1206 = vld [vmem:[%s3 + $0x8] sm:$0xf]
    %v1207 = vld [vmem:[%s3 + $0xc] sm:$0xf]
    %v1208 = vld [vmem:[%s3 + $0x10] sm:$0xf]
    %v1209 = vld [vmem:[%s3 + $0x14] sm:$0xf]
    %v1210 = vld [vmem:[%s3 + $0x18] sm:$0xf]
    %v1211 = vld [vmem:[%s3 + $0x1c] sm:$0xf]
    %v1212 = vld [vmem:[%s3 + $0x20] sm:$0xf]
    %v1213 = vld [vmem:[%s3 + $0x24] sm:$0xf]
    %v1214 = vld [vmem:[%s3 + $0x28] sm:$0xf]
    %v1215 = vld [vmem:[%s3 + $0x2c] sm:$0xf]
    %v1216 = vld [vmem:[%s3 + $0x30] sm:$0xf]
    %v1217 = vld [vmem:[%s3 + $0x34] sm:$0xf]
    %v1218 = vld [vmem:[%s3 + $0x38] sm:$0xf]
    %v1219 = vld [vmem:[%s3 + $0x3c] sm:$0xf]
    %v1220 = vld [vmem:[%s3 + $0x40] sm:$0xf]
    %v1221 = vld [vmem:[%s3 + $0x44] sm:$0xf]
    %v1222 = vld [vmem:[%s3 + $0x48] sm:$0xf]
    %v1223 = vld [vmem:[%s3 + $0x4c] sm:$0xf]
    %v1224 = vld [vmem:[%s3 + $0x50] sm:$0xf]
    %v1225 = vld [vmem:[%s3 + $0x54] sm:$0xf]
    %v1226 = vld [vmem:[%s3 + $0x58] sm:$0xf]
    %v1227 = vld [vmem:[%s3 + $0x5c] sm:$0xf]
    %v1228 = vld [vmem:[%s3 + $0x60] sm:$0xf]
    %v1229 = vld [vmem:[%s3 + $0x64] sm:$0xf]
    %v1230 = vld [vmem:[%s3 + $0x68] sm:$0xf]
    %v1231 = vld [vmem:[%s3 + $0x6c] sm:$0xf]
    %v1232 = vld [vmem:[%s3 + $0x70] sm:$0xf]
    %v1233 = vld [vmem:[%s3 + $0x74] sm:$0xf]
    %v1234 = vld [vmem:[%s3 + $0x78] sm:$0xf]
    %v1235 = vld [vmem:[%s3 + $0x7c] sm:$0xf]
    %v1236 = vld [vmem:[%s3 + $0x80] sm:$0xf]
    %v1237 = vld [vmem:[%s3 + $0x84] sm:$0xf]
    %v1238 = vld [vmem:[%s3 + $0x88] sm:$0xf]
    %v1239 = vld [vmem:[%s3 + $0x8c] sm:$0xf]
    %v1240 = vld [vmem:[%s3 + $0x90] sm:$0xf]
    %v1241 = vld [vmem:[%s3 + $0x94] sm:$0xf]
    %v1242 = vld [vmem:[%s3 + $0x98] sm:$0xf]
    %v1243 = vld [vmem:[%s3 + $0x9c] sm:$0xf]
    %v1244 = vld [vmem:[%s3 + $0xa0] sm:$0xf]
    %v1245 = vld [vmem:[%s3 + $0xa4] sm:$0xf]
    %v1246 = vld [vmem:[%s3 + $0xa8] sm:$0xf]
    %v1247 = vld [vmem:[%s3 + $0xac] sm:$0xf]
    %v1248 = vld [vmem:[%s3 + $0xb0] sm:$0xf]
    %v1249 = vld [vmem:[%s3 + $0xb4] sm:$0xf]
    %v1250 = vld [vmem:[%s3 + $0xb8] sm:$0xf]
    %v1251 = vld [vmem:[%s3 + $0xbc] sm:$0xf]
    %v1252 = vld [vmem:[%s3 + $0xc0] sm:$0xf]
    %v1253 = vld [vmem:[%s3 + $0xc4] sm:$0xf]
    %v1254 = vld [vmem:[%s3 + $0xc8] sm:$0xf]
    %v1255 = vld [vmem:[%s3 + $0xcc] sm:$0xf]
    %v1256 = vld [vmem:[%s3 + $0xd0] sm:$0xf]
    %v1257 = vld [vmem:[%s3 + $0xd4] sm:$0xf]
    %v1258 = vld [vmem:[%s3 + $0xd8] sm:$0xf]
    %v1259 = vld [vmem:[%s3 + $0xdc] sm:$0xf]
    %v1260 = vld [vmem:[%s3 + $0xe0] sm:$0xf]
    %v1261 = vld [vmem:[%s3 + $0xe4] sm:$0xf]
    %v1262 = vld [vmem:[%s3 + $0xe8] sm:$0xf]
    %v1263 = vld [vmem:[%s3 + $0xec] sm:$0xf]
    %v1264 = vld [vmem:[%s3 + $0xf0] sm:$0xf]
    %v1265 = vld [vmem:[%s3 + $0xf4] sm:$0xf]
    %v1266 = vld [vmem:[%s3 + $0xf8] sm:$0xf]
    %v1267 = vld [vmem:[%s3 + $0xfc] sm:$0xf]
    %v1268 = vld [vmem:[%s3 + $0x100] sm:$0x1]
    %v1269 = vunpack.c.l.bf16 %v1268
    %v1270 = vperm.slane %v1269, 0
    %v1335 = vunpack.c.l.b16 %v1204
    %v1336 = vunpack.c.l.b16 %v1205
    %v1337 = vunpack.c.l.b16 %v1206
    %v1338 = vunpack.c.l.b16 %v1207
    %v1339 = vunpack.c.l.b16 %v1208
    %v1340 = vunpack.c.l.b16 %v1209
    %v1341 = vunpack.c.l.b16 %v1210
    %v1342 = vunpack.c.l.b16 %v1211
    %v1343 = vunpack.c.l.b16 %v1212
    %v1344 = vunpack.c.l.b16 %v1213
    %v1345 = vunpack.c.l.b16 %v1214
    %v1346 = vunpack.c.l.b16 %v1215
    %v1347 = vunpack.c.l.b16 %v1216
    %v1348 = vunpack.c.l.b16 %v1217
    %v1349 = vunpack.c.l.b16 %v1218
    %v1350 = vunpack.c.l.b16 %v1219
    %v1351 = vunpack.c.l.b16 %v1220
    %v1352 = vunpack.c.l.b16 %v1221
    %v1353 = vunpack.c.l.b16 %v1222
    %v1354 = vunpack.c.l.b16 %v1223
    %v1355 = vunpack.c.l.b16 %v1224
    %v1356 = vunpack.c.l.b16 %v1225
    %v1357 = vunpack.c.l.b16 %v1226
    %v1358 = vunpack.c.l.b16 %v1227
    %v1359 = vunpack.c.l.b16 %v1228
    %v1360 = vunpack.c.l.b16 %v1229
    %v1361 = vunpack.c.l.b16 %v1230
    %v1362 = vunpack.c.l.b16 %v1231
    %v1363 = vunpack.c.l.b16 %v1232
    %v1364 = vunpack.c.l.b16 %v1233
    %v1365 = vunpack.c.l.b16 %v1234
    %v1366 = vunpack.c.l.b16 %v1235
    %v1367 = vunpack.c.l.b16 %v1236
    %v1368 = vunpack.c.l.b16 %v1237
    %v1369 = vunpack.c.l.b16 %v1238
    %v1370 = vunpack.c.l.b16 %v1239
    %v1371 = vunpack.c.l.b16 %v1240
    %v1372 = vunpack.c.l.b16 %v1241
    %v1373 = vunpack.c.l.b16 %v1242
    %v1374 = vunpack.c.l.b16 %v1243
    %v1375 = vunpack.c.l.b16 %v1244
    %v1376 = vunpack.c.l.b16 %v1245
    %v1377 = vunpack.c.l.b16 %v1246
    %v1378 = vunpack.c.l.b16 %v1247
    %v1379 = vunpack.c.l.b16 %v1248
    %v1380 = vunpack.c.l.b16 %v1249
    %v1381 = vunpack.c.l.b16 %v1250
    %v1382 = vunpack.c.l.b16 %v1251
    %v1383 = vunpack.c.l.b16 %v1252
    %v1384 = vunpack.c.l.b16 %v1253
    %v1385 = vunpack.c.l.b16 %v1254
    %v1386 = vunpack.c.l.b16 %v1255
    %v1387 = vunpack.c.l.b16 %v1256
    %v1388 = vunpack.c.l.b16 %v1257
    %v1389 = vunpack.c.l.b16 %v1258
    %v1390 = vunpack.c.l.b16 %v1259
    %v1391 = vunpack.c.l.b16 %v1260
    %v1392 = vunpack.c.l.b16 %v1261
    %v1393 = vunpack.c.l.b16 %v1262
    %v1394 = vunpack.c.l.b16 %v1263
    %v1395 = vunpack.c.l.b16 %v1264
    %v1396 = vunpack.c.l.b16 %v1265
    %v1397 = vunpack.c.l.b16 %v1266
    %v1398 = vunpack.c.l.b16 %v1267
    %v1399 = vpack.c.b16 %v1336, %v1335
    %v1400 = vpack.c.b16 %v1338, %v1337
    %v1401 = vpack.c.b16 %v1340, %v1339
    %v1402 = vpack.c.b16 %v1342, %v1341
    %v1403 = vpack.c.b16 %v1344, %v1343
    %v1404 = vpack.c.b16 %v1346, %v1345
    %v1405 = vpack.c.b16 %v1348, %v1347
    %v1406 = vpack.c.b16 %v1350, %v1349
    %v1407 = vpack.c.b16 %v1352, %v1351
    %v1408 = vpack.c.b16 %v1354, %v1353
    %v1409 = vpack.c.b16 %v1356, %v1355
    %v1410 = vpack.c.b16 %v1358, %v1357
    %v1411 = vpack.c.b16 %v1360, %v1359
    %v1412 = vpack.c.b16 %v1362, %v1361
    %v1413 = vpack.c.b16 %v1364, %v1363
    %v1414 = vpack.c.b16 %v1366, %v1365
    %v1415 = vpack.c.b16 %v1368, %v1367
    %v1416 = vpack.c.b16 %v1370, %v1369
    %v1417 = vpack.c.b16 %v1372, %v1371
    %v1418 = vpack.c.b16 %v1374, %v1373
    %v1419 = vpack.c.b16 %v1376, %v1375
    %v1420 = vpack.c.b16 %v1378, %v1377
    %v1421 = vpack.c.b16 %v1380, %v1379
    %v1422 = vpack.c.b16 %v1382, %v1381
    %v1423 = vpack.c.b16 %v1384, %v1383
    %v1424 = vpack.c.b16 %v1386, %v1385
    %v1425 = vpack.c.b16 %v1388, %v1387
    %v1426 = vpack.c.b16 %v1390, %v1389
    %v1427 = vpack.c.b16 %v1392, %v1391
    %v1428 = vpack.c.b16 %v1394, %v1393
    %v1429 = vpack.c.b16 %v1396, %v1395
    %v1430 = vpack.c.b16 %v1398, %v1397
    %1463 = vmatpush.bf16.msra.mxu0 %v1406
    %1464 = vmatpush.bf16.msra.mxu0 %v1405
    %1465 = vmatpush.bf16.msra.mxu0 %v1404
    %1466 = vmatpush.bf16.msra.mxu0 %v1403
    %1467 = vmatpush.bf16.msra.mxu0 %v1402
    %1468 = vmatpush.bf16.msra.mxu0 %v1401
    %1469 = vmatpush.bf16.msra.mxu0 %v1400
    %1470 = vmatpush.bf16.msra.mxu0 %v1399
    %1471 = vmatmul.bf16.gmra.mxu0 %v1200
    %v1472 = vpop.f32.mrf.mxu0
    %v1473 = vadd.f32 %v1270, %v1472
    %v1474 = vpop.f32.mrf.mxu0
    %1475 = vdwg.mxu0
    %1476 = vmatpush.bf16.msra.mxu0 %v1414
    %1477 = vmatpush.bf16.msra.mxu0 %v1413
    %1478 = vmatpush.bf16.msra.mxu0 %v1412
    %1479 = vmatpush.bf16.msra.mxu0 %v1411
    %1480 = vmatpush.bf16.msra.mxu0 %v1410
    %1481 = vmatpush.bf16.msra.mxu0 %v1409
    %1482 = vmatpush.bf16.msra.mxu0 %v1408
    %1483 = vmatpush.bf16.msra.mxu0 %v1407
    %1484 = vmatmul.bf16.gmra.mxu0 %v1201
    %v1485 = vpop.f32.mrf.mxu0
    %v1486 = vadd.f32 %v1473, %v1485
    %v1487 = vpop.f32.mrf.mxu0
    %1488 = vdwg.mxu0
    %1489 = vmatpush.bf16.msra.mxu0 %v1422
    %1490 = vmatpush.bf16.msra.mxu0 %v1421
    %1491 = vmatpush.bf16.msra.mxu0 %v1420
    %1492 = vmatpush.bf16.msra.mxu0 %v1419
    %1493 = vmatpush.bf16.msra.mxu0 %v1418
    %1494 = vmatpush.bf16.msra.mxu0 %v1417
    %1495 = vmatpush.bf16.msra.mxu0 %v1416
    %1496 = vmatpush.bf16.msra.mxu0 %v1415
    %1497 = vmatmul.bf16.gmra.mxu0 %v1202
    %v1498 = vpop.f32.mrf.mxu0
    %v1499 = vadd.f32 %v1486, %v1498
    %v1500 = vpop.f32.mrf.mxu0
    %1501 = vdwg.mxu0
    %1502 = vmatpush.bf16.msra.mxu0 %v1430
    %1503 = vmatpush.bf16.msra.mxu0 %v1429
    %1504 = vmatpush.bf16.msra.mxu0 %v1428
    %1505 = vmatpush.bf16.msra.mxu0 %v1427
    %1506 = vmatpush.bf16.msra.mxu0 %v1426
    %1507 = vmatpush.bf16.msra.mxu0 %v1425
    %1508 = vmatpush.bf16.msra.mxu0 %v1424
    %1509 = vmatpush.bf16.msra.mxu0 %v1423
    %1510 = vmatmul.bf16.gmra.mxu0 %v1203
    %v1511 = vpop.f32.mrf.mxu0
    %v1512 = vadd.f32 %v1499, %v1511
    %v1513 = vpop.f32.mrf.mxu0
    %1514 = vdwg.mxu0
    %v1515 = vld [vmem:[%s4] sm:$0x1]
    %1517 = vset.pattern.permute.xlu0 0
    %1518 = vperm.xlu0 %1517, %v1199
    %v1519 = vpop.permute.xlu0 %1518
    %v1522 = vperm.slane %v1515, 0
    %v1524 = vmul.f32 %v1519, %v1522
    %v1525 = vadd.f32 %v1512, %v1524
    %v1526 = vmax.f32 %v1525, 0.0
    %v1527 = vpack.c.bf16 %v1526, %v1526
    %v1528 = vld [vmem:[%s5] sm:$0xf]
    %v1529 = vld [vmem:[%s5 + $0x4] sm:$0xf]
    %v1530 = vld [vmem:[%s5 + $0x8] sm:$0xf]
    %v1531 = vld [vmem:[%s5 + $0xc] sm:$0xf]
    %v1532 = vld [vmem:[%s5 + $0x10] sm:$0xf]
    %v1533 = vld [vmem:[%s5 + $0x14] sm:$0xf]
    %v1534 = vld [vmem:[%s5 + $0x18] sm:$0xf]
    %v1535 = vld [vmem:[%s5 + $0x1c] sm:$0xf]
    %v1536 = vld [vmem:[%s5 + $0x20] sm:$0xf]
    %v1537 = vld [vmem:[%s5 + $0x24] sm:$0xf]
    %v1538 = vld [vmem:[%s5 + $0x28] sm:$0xf]
    %v1539 = vld [vmem:[%s5 + $0x2c] sm:$0xf]
    %v1540 = vld [vmem:[%s5 + $0x30] sm:$0x1]
    %v1541 = vunpack.c.l.bf16 %v1540
    %v1542 = vperm.slane %v1541, 0
    %v1555 = vunpack.c.l.b16 %v1528
    %v1556 = vunpack.c.l.b16 %v1529
    %v1557 = vunpack.c.l.b16 %v1530
    %v1558 = vunpack.c.l.b16 %v1531
    %v1559 = vunpack.c.l.b16 %v1532
    %v1560 = vunpack.c.l.b16 %v1533
    %v1561 = vunpack.c.l.b16 %v1534
    %v1562 = vunpack.c.l.b16 %v1535
    %v1563 = vunpack.c.l.b16 %v1536
    %v1564 = vunpack.c.l.b16 %v1537
    %v1565 = vunpack.c.l.b16 %v1538
    %v1566 = vunpack.c.l.b16 %v1539
    %v1567 = vpack.c.b16 %v1556, %v1555
    %v1568 = vpack.c.b16 %v1558, %v1557
    %v1569 = vpack.c.b16 %v1560, %v1559
    %v1570 = vpack.c.b16 %v1562, %v1561
    %v1571 = vpack.c.b16 %v1564, %v1563
    %v1572 = vpack.c.b16 %v1566, %v1565
    %vm1579 = vcmask 785408
    %v1581 = vsel %vm1579, %v1527, 0
    %1583 = vmatpush.bf16.msra.mxu0 0
    %1584 = vmatpush.bf16.msra.mxu0 0
    %1585 = vmatpush.bf16.msra.mxu0 %v1572
    %1586 = vmatpush.bf16.msra.mxu0 %v1571
    %1587 = vmatpush.bf16.msra.mxu0 %v1570
    %1588 = vmatpush.bf16.msra.mxu0 %v1569
    %1589 = vmatpush.bf16.msra.mxu0 %v1568
    %1590 = vmatpush.bf16.msra.mxu0 %v1567
    %1591 = vmatmul.bf16.gmra.mxu0 %v1581
    %v1592 = vpop.f32.mrf.mxu0
    %v1593 = vadd.f32 %v1542, %v1592
    %v1594 = vpop.f32.mrf.mxu0
    %1595 = vdwg.mxu0
    %v1596 = vmax.f32 %v1593, 0.0
    %vm1597 = vcmask 277760
    %v1598 = vsel %vm1597, %v1593, -inf
    %1599 = vmax.xlane.f32.xlu0 %v1598
    %v1600 = vpop.xlane.xlu0 %1599
    %v1601 = vsub.f32 %v1593, %v1600
    %v1602 = vmul.f32 %v1601, 1.442695
    %v1603 = vpow.pop %v1602
    %1605 = vrot.lane.b32.xlu0 %v1603, 96
    %v1606 = vpop.permute.xlu0 %1605
    %vm1608 = vcmask 15360
    %v1609 = vsel %vm1608, %v1606, 0.0
    %1610 = vadd.xlane.f32.xlu0 %v1609
    %v1611 = vpop.xlane.xlu0 %1610
    %v1612 = vrcp.pop %v1611
    %v1613 = vmul.f32 %v1603, %v1612
    %vm1614 = vcmask 294160
    %v1615 = vsel %vm1614, %v1593, -inf
    %1616 = vmax.xlane.f32.xlu0 %v1615
    %v1617 = vpop.xlane.xlu0 %1616
    %v1618 = vsub.f32 %v1593, %v1617
    %v1619 = vmul.f32 %v1618, 1.442695
    %v1620 = vpow.pop %v1619
    %1622 = vrot.lane.b32.xlu0 %v1620, 94
    %v1623 = vpop.permute.xlu0 %1622
    %v1625 = vsel %vm1608, %v1623, 0.0
    %1626 = vadd.xlane.f32.xlu0 %v1625
    %v1627 = vpop.xlane.xlu0 %1626
    %v1628 = vrcp.pop %v1627
    %v1629 = vmul.f32 %v1620, %v1628
    %v1630 = vpack.c.bf16 %v1596, %v1596
    %v1631 = vld [vmem:[%s6] sm:$0xf]
    %v1632 = vld [vmem:[%s6 + $0x4] sm:$0xf]
    %v1633 = vld [vmem:[%s6 + $0x8] sm:$0xf]
    %v1634 = vld [vmem:[%s6 + $0xc] sm:$0xf]
    %v1635 = vld [vmem:[%s6 + $0x10] sm:$0x1]
    %v1636 = vunpack.c.l.bf16 %v1635
    %v1637 = vperm.slane %v1636, 0
    %v1642 = vunpack.c.l.b16 %v1631
    %v1643 = vunpack.c.l.b16 %v1632
    %v1644 = vunpack.c.l.b16 %v1633
    %v1645 = vunpack.c.l.b16 %v1634
    %v1646 = vpack.c.b16 %v1643, %v1642
    %v1647 = vpack.c.b16 %v1645, %v1644
    %v1651 = vsel %vm103, %v1630, 0
    %1653 = vmatpush.bf16.msra.mxu0 0
    %1654 = vmatpush.bf16.msra.mxu0 0
    %1655 = vmatpush.bf16.msra.mxu0 0
    %1656 = vmatpush.bf16.msra.mxu0 0
    %1657 = vmatpush.bf16.msra.mxu0 0
    %1658 = vmatpush.bf16.msra.mxu0 0
    %1659 = vmatpush.bf16.msra.mxu0 %v1647
    %1660 = vmatpush.bf16.msra.mxu0 %v1646
    %1661 = vmatmul.bf16.gmra.mxu0 %v1651
    %v1662 = vpop.f32.mrf.mxu0
    %v1663 = vadd.f32 %v1637, %v1662
    %v1664 = vpop.f32.mrf.mxu0
    %1665 = vdwg.mxu0
    %v1666 = vsel %vm1608, %v1663, -inf
    %1667 = vmax.xlane.f32.xlu0 %v1666
    %v1668 = vpop.xlane.xlu0 %1667
    %v1669 = vsub.f32 %v1663, %v1668
    %v1670 = vmul.f32 %v1669, 1.442695
    %v1671 = vpow.pop %v1670
    %v1672 = vsel %vm1608, %v1671, 0.0
    %1673 = vadd.xlane.f32.xlu0 %v1672
    %v1674 = vpop.xlane.xlu0 %1673
    %v1675 = vrcp.pop %v1674
    %v1676 = vmul.f32 %v1671, %v1675
    %1678 = vset.pattern.permute.xlu0 0
    %1679 = vperm.xlu0 %1678, %v1676
    %v1680 = vpop.permute.xlu0 %1679
    %v1682 = vmul.f32 %v1613, %v1680
    %1683 = vset.pattern.permute.xlu0 1
    %1684 = vperm.xlu0 %1683, %v1676
    %v1685 = vpop.permute.xlu0 %1684
    %v1687 = vmul.f32 %v1629, %v1685
    %1689 = vrot.lane.b32.xlu0 %v1687, 126
    %v1690 = vpop.permute.xlu0 %1689
    %v1692 = vadd.f32 %v1682, %v1690
    %1694 = vrot.lane.b32.xlu0 %v1692, 96
    %v1695 = vpop.permute.xlu0 %1694
    %1697 = vst.msk [vmem:[%s7] sm:$0xff] %vm1608, %v1695
    // Predicated region
    $region34: #{tpu_custom_call.1} parent=1 // pred_check
      _
    $region35: #{tpu_custom_call.1} parent=1 // pred_check_branch
      %1699 = sbr.rel (0) target = $region37
    $region36: #{tpu_custom_call.1} parent=1 // pred_region
      _
    $region37: #{tpu_custom_call.1} parent=1 // pred_fallthru
      _
    // Predicated region
    $region38: #{tpu_custom_call.1} parent=1 // pred_check
      _
    $region39: #{tpu_custom_call.1} parent=1 // pred_check_branch
      %1701 = sbr.rel (0) target = $region41
    $region40: #{tpu_custom_call.1} parent=1 // pred_region
      _
    $region41: #{tpu_custom_call.1} parent=1 // pred_fallthru
      _
    %1702 = vsyncpa [#allocation3], 1

</llo_original>
